<compile_context>
chip_gen: v7x
topology: tpu7x:2x2x1
jax: 0.10.0
libtpu: 0.0.40
codegen_flags: <defaults>
</compile_context>

<pallas_src>
import functools

import jax
import jax.numpy as jnp
from jax import lax
from jax.experimental import pallas as pl
from jax.experimental.pallas import tpu as pltpu

_LANE = 128
_SUBLANE = 8


def _round_up(x, m):
    return ((x + m - 1) // m) * m


# ----------------------------------------------------------------------------
# Weight preparation (done once, outside the kernel).
# ----------------------------------------------------------------------------
def _embed_sq_t(w, H, Hp):
    """nn.Linear weight (H, H) -> padded transpose (Hp, Hp)."""
    out = jnp.zeros((Hp, Hp), jnp.float32)
    return out.at[:H, :H].set(w.T)


def _embed_gates_t(w_gates, H, Hp):
    """Gate-stacked weight (3H, H) -> (Hp, 3Hp), gate g at lanes [g*Hp, g*Hp+H)."""
    out = jnp.zeros((Hp, 3 * Hp), jnp.float32)
    for g in range(3):
        out = out.at[:H, g * Hp:g * Hp + H].set(w_gates[g * H:(g + 1) * H, :].T)
    return out


def _embed_gates_b(b, H, Hp):
    """Gate-stacked bias (3H,) -> (1, 3Hp), gate g at lanes [g*Hp, g*Hp+H)."""
    out = jnp.zeros((1, 3 * Hp), jnp.float32)
    for g in range(3):
        out = out.at[0, g * Hp:g * Hp + H].set(b[g * H:(g + 1) * H])
    return out


def _embed_vec(b, H, Hp):
    out = jnp.zeros((1, Hp), jnp.float32)
    return out.at[0, :H].set(b)


# ----------------------------------------------------------------------------
# Kernel: all `num_steps` GNNCell iterations for a block of Bt graphs,
# with hidden / adjacency / weights kept VMEM-resident.
# ----------------------------------------------------------------------------
def _gnn_kernel(a_in_ref, a_out_ref, h_ref,
                w_h_ref, b_h_ref, w_ih_ref, b_ih_ref,
                out_ref, *, num_steps, compute_dtype, vpu_aggregate):
    bt, n, hp = h_ref.shape

    a_in = a_in_ref[...]                      # (Bt, Np, Np)
    a_out = a_out_ref[...]
    w_h = w_h_ref[...]                        # (Hp, 5Hp)  compute dtype
    b_h = b_h_ref[...]                        # (1, 5Hp)   f32
    w_ih = w_ih_ref[...]                      # (2Hp, 3Hp) compute dtype
    b_ih = b_ih_ref[...]                      # (1, 3Hp)   f32 (b_iah/b_oah folded)

    if vpu_aggregate:
        # Tiny Np: per-graph (Np x Np)x(Np x Hp) matmuls would use <10% of the
        # MXU and serialize with the big fused matmul -> do the aggregation as
        # VPU broadcast-multiply-accumulates over j instead.
        a_in_c = a_in.astype(jnp.float32)
        a_out_c = a_out.astype(jnp.float32)

        def aggregate(a_f, eh2):
            eh = eh2.reshape(bt, n, hp)
            acc = jnp.zeros((bt, n, hp), jnp.float32)
            for j in range(n):                # static unroll, n <= 32 here
                acc = acc + a_f[:, :, j:j + 1] * eh[:, j:j + 1, :]
            return acc.reshape(bt * n, hp)
    else:
        a_in_c = a_in
        a_out_c = a_out

        def aggregate(a_c, eh2):
            eh = eh2.reshape(bt, n, hp).astype(compute_dtype)
            out = jnp.einsum('bij,bjh->bih', a_c, eh,
                             preferred_element_type=jnp.float32)
            return out.reshape(bt * n, hp)

    def cell(h2):
        # Fused h @ [W_edge_in^T | W_edge_out^T | W_hh^T]: one wide MXU pass,
        # then lane-aligned slices (Hp % 128 == 0 -> free views).
        hw = jnp.dot(h2.astype(compute_dtype), w_h,
                     preferred_element_type=jnp.float32) + b_h
        eh_in = hw[:, 0 * hp:1 * hp]
        eh_out = hw[:, 1 * hp:2 * hp]
        gh = hw[:, 2 * hp:5 * hp]             # (Bt*Np, 3Hp)

        inp_in = aggregate(a_in_c, eh_in)     # (Bt*Np, Hp)
        inp_out = aggregate(a_out_c, eh_out)

        # Gate projection as a single K=2Hp matmul (fills the 256-deep MXU on
        # v6e/v7x); b_iah/b_oah are already folded into b_ih.
        inputs = jnp.concatenate([inp_in, inp_out], axis=-1)
        gi = jnp.dot(inputs.astype(compute_dtype), w_ih,
                     preferred_element_type=jnp.float32) + b_ih

        i_r, i_i, i_n = gi[:, :hp], gi[:, hp:2 * hp], gi[:, 2 * hp:]
        h_r, h_i, h_n = gh[:, :hp], gh[:, hp:2 * hp], gh[:, 2 * hp:]

        resetgate = jax.nn.sigmoid(i_r + h_r)
        inputgate = jax.nn.sigmoid(i_i + h_i)
        newgate = jnp.tanh(i_n + resetgate * h_n)
        return newgate + inputgate * (h2 - newgate)

    # f32 hidden carry (accuracy), VMEM/vreg resident across all steps.
    h2 = h_ref[...].astype(jnp.float32).reshape(bt * n, hp)
    if num_steps <= 8:
        for _ in range(num_steps):
            h2 = cell(h2)
    else:
        h2 = lax.fori_loop(0, num_steps, lambda _s, h: cell(h), h2)

    out_ref[...] = h2.reshape(bt, n, hp).astype(out_ref.dtype)


# ----------------------------------------------------------------------------
# Wrapper: GNN.forward (truncate hidden to A's node count, then `step` cells).
# ----------------------------------------------------------------------------
def gnn_forward(A, hidden, params, step=1, batch_block=None,
                compute_dtype=jnp.float32):
    B, N, twoN = A.shape
    assert twoN == 2 * N
    if hidden.shape[1] != N:
        hidden = hidden[:, :N, :]
    H = hidden.shape[-1]
    out_dtype = hidden.dtype

    Hp = _round_up(H, _LANE)          # lane-dense hidden dim
    Np = _round_up(N, _SUBLANE)       # sublane-aligned node count
    compute_dtype = jnp.dtype(compute_dtype)
    in_item = compute_dtype.itemsize

    # --- VMEM-aware batch block ---------------------------------------------
    if batch_block is None:
        target_rows = 512                      # 512-1024 node rows per grid step
        bt_rows = max(1, target_rows // Np)
        # per-graph cost: double-buffered A_in/A_out/h/out blocks + f32 live
        # intermediates inside the kernel (hw, gh, gi, inputs, gates, ...)
        per_graph = (2 * (2 * Np * Np * in_item + 2 * Np * Hp * 4)
                     + 16 * Np * Hp * 4)
        weights_b = 2 * (11 * Hp * Hp * in_item + 8 * Hp * 4)
        budget = 24 << 20                      # fits v7x's 64 MiB VMEM with room
        bt_vmem = max(1, (budget - weights_b) // per_graph)
        batch_block = max(1, min(B, bt_rows, int(bt_vmem)))
        if B >= 2:                             # keep grid >= 2 so both v7x TCs work
            batch_block = min(batch_block, _round_up(B, 2) // 2)
    Bt = int(batch_block)
    Bp = _round_up(B, Bt)

    # --- pad activations once (zeros in padded lanes/nodes stay inert) -------
    a_in = jnp.zeros((Bp, Np, Np), compute_dtype).at[:B, :N, :N].set(
        A[:, :, :N].astype(compute_dtype))
    a_out = jnp.zeros((Bp, Np, Np), compute_dtype).at[:B, :N, :N].set(
        A[:, :, N:2 * N].astype(compute_dtype))
    h_p = jnp.zeros((Bp, Np, Hp), jnp.float32).at[:B, :N, :H].set(
        hidden.astype(jnp.float32))

    # --- pad / transpose / fuse weights once (hoisted out of the kernel) -----
    w_h = jnp.concatenate([
        _embed_sq_t(params["w_edge_in"], H, Hp),
        _embed_sq_t(params["w_edge_out"], H, Hp),
        _embed_gates_t(params["w_hh"], H, Hp)], axis=1)            # (Hp, 5Hp)
    b_h = jnp.concatenate([
        _embed_vec(params["b_edge_in"], H, Hp),
        _embed_vec(params["b_edge_out"], H, Hp),
        _embed_gates_b(params["b_hh"], H, Hp)], axis=1)            # (1, 5Hp)
    w_ih = jnp.concatenate([
        _embed_gates_t(params["w_ih"][:, :H], H, Hp),
        _embed_gates_t(params["w_ih"][:, H:2 * H], H, Hp)], axis=0)  # (2Hp, 3Hp)
    # Fold b_iah / b_oah into the gate bias (they only feed the gate matmul).
    b_agg = jnp.concatenate([_embed_vec(params["b_iah"], H, Hp),
                             _embed_vec(params["b_oah"], H, Hp)], axis=1)  # (1, 2Hp)
    b_ih = _embed_gates_b(params["b_ih"], H, Hp) + jnp.dot(
        b_agg, w_ih, precision=jax.lax.Precision.HIGHEST)         # (1, 3Hp)

    w_h_c = w_h.astype(compute_dtype)
    w_ih_c = w_ih.astype(compute_dtype)

    # --- vmem_limit_bytes from actual block sizes ----------------------------
    vmem_est = (2 * Bt * (2 * Np * Np * in_item + Np * Hp * 4)     # inputs (2-buf)
                + 2 * Bt * Np * Hp * 4                             # output (2-buf)
                + 2 * (11 * Hp * Hp * in_item + 8 * Hp * 4)        # weights (2-buf)
                + 16 * Bt * Np * Hp * 4)                           # f32 intermediates
    vmem_limit = int(min(max(vmem_est + (4 << 20), 32 << 20), 128 << 20))

    kernel = functools.partial(
        _gnn_kernel,
        num_steps=int(step),
        compute_dtype=compute_dtype,
        vpu_aggregate=(Np <= 32))

    grid_spec = pltpu.PrefetchScalarGridSpec(
        num_scalar_prefetch=0,
        grid=(Bp // Bt,),
        in_specs=[
            pl.BlockSpec((Bt, Np, Np), lambda i: (i, 0, 0)),   # A_in
            pl.BlockSpec((Bt, Np, Np), lambda i: (i, 0, 0)),   # A_out
            pl.BlockSpec((Bt, Np, Hp), lambda i: (i, 0, 0)),   # hidden
            pl.BlockSpec((Hp, 5 * Hp), lambda i: (0, 0)),      # fused h-weights
            pl.BlockSpec((1, 5 * Hp), lambda i: (0, 0)),       # fused h-biases
            pl.BlockSpec((2 * Hp, 3 * Hp), lambda i: (0, 0)),  # fused gate weights
            pl.BlockSpec((1, 3 * Hp), lambda i: (0, 0)),       # effective gate bias
        ],
        out_specs=pl.BlockSpec((Bt, Np, Hp), lambda i: (i, 0, 0)),
    )
    # TODO(synk): single-buffer the index-invariant weight blocks
    # (pipeline_mode=pl.Buffered(1)) to reclaim VMEM on v7x; they are only
    # DMA'd once regardless, so this is a capacity-only knob.

    out = pl.pallas_call(
        kernel,
        out_shape=jax.ShapeDtypeStruct((Bp, Np, Hp), jnp.float32),
        grid_spec=grid_spec,
        compiler_params=pltpu.CompilerParams(
            dimension_semantics=("parallel",),
            vmem_limit_bytes=vmem_limit),
    )(a_in, a_out, h_p, w_h_c, b_h, w_ih_c, b_ih)

    return out[:B, :N, :H].astype(out_dtype)


# ----------------------------------------------------------------------------
# Synthetic parameters + pure-JAX reference (mirrors the PyTorch module).
# ----------------------------------------------------------------------------
def init_params(key, hidden_size):
    H = hidden_size
    ks = jax.random.split(key, 10)
    std = 1.0 / jnp.sqrt(jnp.float32(H))
    return {
        "w_ih": jax.random.uniform(ks[0], (3 * H, 2 * H), jnp.float32, -std, std),
        "w_hh": jax.random.uniform(ks[1], (3 * H, H), jnp.float32, -std, std),
        "b_ih": jax.random.uniform(ks[2], (3 * H,), jnp.float32, -std, std),
        "b_hh": jax.random.uniform(ks[3], (3 * H,), jnp.float32, -std, std),
        "b_iah": jax.random.uniform(ks[4], (H,), jnp.float32, -std, std),
        "b_oah": jax.random.uniform(ks[5], (H,), jnp.float32, -std, std),
        "w_edge_in": jax.random.uniform(ks[6], (H, H), jnp.float32, -std, std),
        "b_edge_in": jax.random.uniform(ks[7], (H,), jnp.float32, -std, std),
        "w_edge_out": jax.random.uniform(ks[8], (H, H), jnp.float32, -std, std),
        "b_edge_out": jax.random.uniform(ks[9], (H,), jnp.float32, -std, std),
        # TODO(synk): linear_edge_f exists in the module but is unused in forward.
    }


def _reference_forward(A, hidden, params, step=1):
    N = A.shape[1]
    if hidden.shape[1] != N:
        hidden = hidden[:, :N, :]
    prec = jax.lax.Precision.HIGHEST
    for _ in range(step):
        eh_in = jnp.matmul(hidden, params["w_edge_in"].T, precision=prec) + params["b_edge_in"]
        eh_out = jnp.matmul(hidden, params["w_edge_out"].T, precision=prec) + params["b_edge_out"]
        input_in = jnp.matmul(A[:, :, :N], eh_in, precision=prec) + params["b_iah"]
        input_out = jnp.matmul(A[:, :, N:2 * N], eh_out, precision=prec) + params["b_oah"]
        inputs = jnp.concatenate([input_in, input_out], axis=2)
        gi = jnp.matmul(inputs, params["w_ih"].T, precision=prec) + params["b_ih"]
        gh = jnp.matmul(hidden, params["w_hh"].T, precision=prec) + params["b_hh"]
        i_r, i_i, i_n = jnp.split(gi, 3, axis=2)
        h_r, h_i, h_n = jnp.split(gh, 3, axis=2)
        resetgate = jax.nn.sigmoid(i_r + h_r)
        inputgate = jax.nn.sigmoid(i_i + h_i)
        newgate = jnp.tanh(i_n + resetgate * h_n)
        hidden = newgate + inputgate * (hidden - newgate)
    return hidden


if __name__ == "__main__":
    B, N, H, STEP = 2, 8, 32, 2
    key = jax.random.PRNGKey(0)
    k_a, k_h, k_p = jax.random.split(key, 3)

    A = jax.random.uniform(k_a, (B, N, 2 * N), jnp.float32)       # (in | out) adjacency
    hidden = jax.random.normal(k_h, (B, N, H), jnp.float32)
    params = init_params(k_p, H)

    out = gnn_forward(A, hidden, params, step=STEP)
    out = jax.block_until_ready(out)

    ref = _reference_forward(A, hidden, params, step=STEP)
    assert out.shape == (B, N, H)
    assert jnp.allclose(out, ref, atol=1e-4, rtol=1e-4), float(jnp.max(jnp.abs(out - ref)))

    print("KERNEL_OK")
</pallas_src>

<mosaic_0001>
module attributes {stable_mosaic.version = 11 : i64} {
  func.func @_gnn_kernel(%arg0: i32, %arg1: memref<1x8x8xf32, #tpu.memory_space<vmem>>, %arg2: memref<1x8x8xf32, #tpu.memory_space<vmem>>, %arg3: memref<1x8x128xf32, #tpu.memory_space<vmem>>, %arg4: memref<128x640xf32, #tpu.memory_space<vmem>>, %arg5: memref<1x640xf32, #tpu.memory_space<vmem>>, %arg6: memref<256x384xf32, #tpu.memory_space<vmem>>, %arg7: memref<1x384xf32, #tpu.memory_space<vmem>>, %arg8: memref<1x8x128xf32, #tpu.memory_space<vmem>>) attributes {dimension_semantics = [#tpu.dimension_semantics<parallel>], iteration_bounds = array<i64: 2>, scalar_prefetch = 0 : i64, scratch_operands = 0 : i64, tpu.core_type = #tpu.core_type<tc>, window_params = [{transform_indices = @transform_0, window_bounds = array<i64: 1, 8, 8>}, {transform_indices = @transform_1, window_bounds = array<i64: 1, 8, 8>}, {transform_indices = @transform_2, window_bounds = array<i64: 1, 8, 128>}, {pipeline_mode = #tpu.pipeline_mode<synchronous>, transform_indices = @transform_3, window_bounds = array<i64: 128, 640>}, {pipeline_mode = #tpu.pipeline_mode<synchronous>, transform_indices = @transform_4, window_bounds = array<i64: 1, 640>}, {pipeline_mode = #tpu.pipeline_mode<synchronous>, transform_indices = @transform_5, window_bounds = array<i64: 256, 384>}, {pipeline_mode = #tpu.pipeline_mode<synchronous>, transform_indices = @transform_6, window_bounds = array<i64: 1, 384>}, {transform_indices = @transform_7, window_bounds = array<i64: 1, 8, 128>}]} {
    %c0 = arith.constant 0 : index
    %c0_0 = arith.constant 0 : index
    %c0_1 = arith.constant 0 : index
    %0 = vector.load %arg1[%c0, %c0_0, %c0_1] : memref<1x8x8xf32, #tpu.memory_space<vmem>>, vector<1x8x8xf32>
    %c0_2 = arith.constant 0 : index
    %c0_3 = arith.constant 0 : index
    %c0_4 = arith.constant 0 : index
    %1 = vector.load %arg2[%c0_2, %c0_3, %c0_4] : memref<1x8x8xf32, #tpu.memory_space<vmem>>, vector<1x8x8xf32>
    %c0_5 = arith.constant 0 : index
    %c0_6 = arith.constant 0 : index
    %2 = vector.load %arg4[%c0_5, %c0_6] : memref<128x640xf32, #tpu.memory_space<vmem>>, vector<128x640xf32>
    %c0_7 = arith.constant 0 : index
    %c0_8 = arith.constant 0 : index
    %3 = vector.load %arg5[%c0_7, %c0_8] : memref<1x640xf32, #tpu.memory_space<vmem>>, vector<1x640xf32>
    %c0_9 = arith.constant 0 : index
    %c0_10 = arith.constant 0 : index
    %4 = vector.load %arg6[%c0_9, %c0_10] : memref<256x384xf32, #tpu.memory_space<vmem>>, vector<256x384xf32>
    %c0_11 = arith.constant 0 : index
    %c0_12 = arith.constant 0 : index
    %5 = vector.load %arg7[%c0_11, %c0_12] : memref<1x384xf32, #tpu.memory_space<vmem>>, vector<1x384xf32>
    %c0_13 = arith.constant 0 : index
    %c0_14 = arith.constant 0 : index
    %c0_15 = arith.constant 0 : index
    %6 = vector.load %arg3[%c0_13, %c0_14, %c0_15] : memref<1x8x128xf32, #tpu.memory_space<vmem>>, vector<1x8x128xf32>
    %7 = vector.shape_cast %6 : vector<1x8x128xf32> to vector<8x128xf32>
    %cst = arith.constant dense<0.000000e+00> : vector<8x640xf32>
    %8 = tpu.matmul %7, %2, %cst {dimension_numbers = #tpu.dot_dimension_numbers<[1], [0], [0], [1], [0, 0, 1, 1], [], []>} : vector<8x128xf32>, vector<128x640xf32>, vector<8x640xf32> -> vector<8x640xf32>
    %9 = vector.broadcast %3 : vector<1x640xf32> to vector<8x640xf32>
    %10 = arith.addf %8, %9 : vector<8x640xf32>
    %11 = vector.extract_strided_slice %10 {offsets = [0, 0], sizes = [8, 128], strides = [1, 1]} : vector<8x640xf32> to vector<8x128xf32>
    %12 = vector.extract_strided_slice %10 {offsets = [0, 128], sizes = [8, 128], strides = [1, 1]} : vector<8x640xf32> to vector<8x128xf32>
    %13 = vector.extract_strided_slice %10 {offsets = [0, 256], sizes = [8, 384], strides = [1, 1]} : vector<8x640xf32> to vector<8x384xf32>
    %14 = vector.shape_cast %11 : vector<8x128xf32> to vector<1x8x128xf32>
    %cst_16 = arith.constant 0.000000e+00 : f32
    %15 = vector.broadcast %cst_16 : f32 to vector<1x8x128xf32>
    %16 = vector.extract_strided_slice %0 {offsets = [0, 0, 0], sizes = [1, 8, 1], strides = [1, 1, 1]} : vector<1x8x8xf32> to vector<1x8x1xf32>
    %17 = vector.extract_strided_slice %14 {offsets = [0, 0, 0], sizes = [1, 1, 128], strides = [1, 1, 1]} : vector<1x8x128xf32> to vector<1x1x128xf32>
    %18 = vector.broadcast %16 : vector<1x8x1xf32> to vector<1x8x128xf32>
    %19 = vector.broadcast %17 : vector<1x1x128xf32> to vector<1x8x128xf32>
    %20 = arith.mulf %18, %19 : vector<1x8x128xf32>
    %21 = arith.addf %15, %20 : vector<1x8x128xf32>
    %22 = vector.extract_strided_slice %0 {offsets = [0, 0, 1], sizes = [1, 8, 1], strides = [1, 1, 1]} : vector<1x8x8xf32> to vector<1x8x1xf32>
    %23 = vector.extract_strided_slice %14 {offsets = [0, 1, 0], sizes = [1, 1, 128], strides = [1, 1, 1]} : vector<1x8x128xf32> to vector<1x1x128xf32>
    %24 = vector.broadcast %22 : vector<1x8x1xf32> to vector<1x8x128xf32>
    %25 = vector.broadcast %23 : vector<1x1x128xf32> to vector<1x8x128xf32>
    %26 = arith.mulf %24, %25 : vector<1x8x128xf32>
    %27 = arith.addf %21, %26 : vector<1x8x128xf32>
    %28 = vector.extract_strided_slice %0 {offsets = [0, 0, 2], sizes = [1, 8, 1], strides = [1, 1, 1]} : vector<1x8x8xf32> to vector<1x8x1xf32>
    %29 = vector.extract_strided_slice %14 {offsets = [0, 2, 0], sizes = [1, 1, 128], strides = [1, 1, 1]} : vector<1x8x128xf32> to vector<1x1x128xf32>
    %30 = vector.broadcast %28 : vector<1x8x1xf32> to vector<1x8x128xf32>
    %31 = vector.broadcast %29 : vector<1x1x128xf32> to vector<1x8x128xf32>
    %32 = arith.mulf %30, %31 : vector<1x8x128xf32>
    %33 = arith.addf %27, %32 : vector<1x8x128xf32>
    %34 = vector.extract_strided_slice %0 {offsets = [0, 0, 3], sizes = [1, 8, 1], strides = [1, 1, 1]} : vector<1x8x8xf32> to vector<1x8x1xf32>
    %35 = vector.extract_strided_slice %14 {offsets = [0, 3, 0], sizes = [1, 1, 128], strides = [1, 1, 1]} : vector<1x8x128xf32> to vector<1x1x128xf32>
    %36 = vector.broadcast %34 : vector<1x8x1xf32> to vector<1x8x128xf32>
    %37 = vector.broadcast %35 : vector<1x1x128xf32> to vector<1x8x128xf32>
    %38 = arith.mulf %36, %37 : vector<1x8x128xf32>
    %39 = arith.addf %33, %38 : vector<1x8x128xf32>
    %40 = vector.extract_strided_slice %0 {offsets = [0, 0, 4], sizes = [1, 8, 1], strides = [1, 1, 1]} : vector<1x8x8xf32> to vector<1x8x1xf32>
    %41 = vector.extract_strided_slice %14 {offsets = [0, 4, 0], sizes = [1, 1, 128], strides = [1, 1, 1]} : vector<1x8x128xf32> to vector<1x1x128xf32>
    %42 = vector.broadcast %40 : vector<1x8x1xf32> to vector<1x8x128xf32>
    %43 = vector.broadcast %41 : vector<1x1x128xf32> to vector<1x8x128xf32>
    %44 = arith.mulf %42, %43 : vector<1x8x128xf32>
    %45 = arith.addf %39, %44 : vector<1x8x128xf32>
    %46 = vector.extract_strided_slice %0 {offsets = [0, 0, 5], sizes = [1, 8, 1], strides = [1, 1, 1]} : vector<1x8x8xf32> to vector<1x8x1xf32>
    %47 = vector.extract_strided_slice %14 {offsets = [0, 5, 0], sizes = [1, 1, 128], strides = [1, 1, 1]} : vector<1x8x128xf32> to vector<1x1x128xf32>
    %48 = vector.broadcast %46 : vector<1x8x1xf32> to vector<1x8x128xf32>
    %49 = vector.broadcast %47 : vector<1x1x128xf32> to vector<1x8x128xf32>
    %50 = arith.mulf %48, %49 : vector<1x8x128xf32>
    %51 = arith.addf %45, %50 : vector<1x8x128xf32>
    %52 = vector.extract_strided_slice %0 {offsets = [0, 0, 6], sizes = [1, 8, 1], strides = [1, 1, 1]} : vector<1x8x8xf32> to vector<1x8x1xf32>
    %53 = vector.extract_strided_slice %14 {offsets = [0, 6, 0], sizes = [1, 1, 128], strides = [1, 1, 1]} : vector<1x8x128xf32> to vector<1x1x128xf32>
    %54 = vector.broadcast %52 : vector<1x8x1xf32> to vector<1x8x128xf32>
    %55 = vector.broadcast %53 : vector<1x1x128xf32> to vector<1x8x128xf32>
    %56 = arith.mulf %54, %55 : vector<1x8x128xf32>
    %57 = arith.addf %51, %56 : vector<1x8x128xf32>
    %58 = vector.extract_strided_slice %0 {offsets = [0, 0, 7], sizes = [1, 8, 1], strides = [1, 1, 1]} : vector<1x8x8xf32> to vector<1x8x1xf32>
    %59 = vector.extract_strided_slice %14 {offsets = [0, 7, 0], sizes = [1, 1, 128], strides = [1, 1, 1]} : vector<1x8x128xf32> to vector<1x1x128xf32>
    %60 = vector.broadcast %58 : vector<1x8x1xf32> to vector<1x8x128xf32>
    %61 = vector.broadcast %59 : vector<1x1x128xf32> to vector<1x8x128xf32>
    %62 = arith.mulf %60, %61 : vector<1x8x128xf32>
    %63 = arith.addf %57, %62 : vector<1x8x128xf32>
    %64 = vector.shape_cast %63 : vector<1x8x128xf32> to vector<8x128xf32>
    %65 = vector.shape_cast %12 : vector<8x128xf32> to vector<1x8x128xf32>
    %cst_17 = arith.constant 0.000000e+00 : f32
    %66 = vector.broadcast %cst_17 : f32 to vector<1x8x128xf32>
    %67 = vector.extract_strided_slice %1 {offsets = [0, 0, 0], sizes = [1, 8, 1], strides = [1, 1, 1]} : vector<1x8x8xf32> to vector<1x8x1xf32>
    %68 = vector.extract_strided_slice %65 {offsets = [0, 0, 0], sizes = [1, 1, 128], strides = [1, 1, 1]} : vector<1x8x128xf32> to vector<1x1x128xf32>
    %69 = vector.broadcast %67 : vector<1x8x1xf32> to vector<1x8x128xf32>
    %70 = vector.broadcast %68 : vector<1x1x128xf32> to vector<1x8x128xf32>
    %71 = arith.mulf %69, %70 : vector<1x8x128xf32>
    %72 = arith.addf %66, %71 : vector<1x8x128xf32>
    %73 = vector.extract_strided_slice %1 {offsets = [0, 0, 1], sizes = [1, 8, 1], strides = [1, 1, 1]} : vector<1x8x8xf32> to vector<1x8x1xf32>
    %74 = vector.extract_strided_slice %65 {offsets = [0, 1, 0], sizes = [1, 1, 128], strides = [1, 1, 1]} : vector<1x8x128xf32> to vector<1x1x128xf32>
    %75 = vector.broadcast %73 : vector<1x8x1xf32> to vector<1x8x128xf32>
    %76 = vector.broadcast %74 : vector<1x1x128xf32> to vector<1x8x128xf32>
    %77 = arith.mulf %75, %76 : vector<1x8x128xf32>
    %78 = arith.addf %72, %77 : vector<1x8x128xf32>
    %79 = vector.extract_strided_slice %1 {offsets = [0, 0, 2], sizes = [1, 8, 1], strides = [1, 1, 1]} : vector<1x8x8xf32> to vector<1x8x1xf32>
    %80 = vector.extract_strided_slice %65 {offsets = [0, 2, 0], sizes = [1, 1, 128], strides = [1, 1, 1]} : vector<1x8x128xf32> to vector<1x1x128xf32>
    %81 = vector.broadcast %79 : vector<1x8x1xf32> to vector<1x8x128xf32>
    %82 = vector.broadcast %80 : vector<1x1x128xf32> to vector<1x8x128xf32>
    %83 = arith.mulf %81, %82 : vector<1x8x128xf32>
    %84 = arith.addf %78, %83 : vector<1x8x128xf32>
    %85 = vector.extract_strided_slice %1 {offsets = [0, 0, 3], sizes = [1, 8, 1], strides = [1, 1, 1]} : vector<1x8x8xf32> to vector<1x8x1xf32>
    %86 = vector.extract_strided_slice %65 {offsets = [0, 3, 0], sizes = [1, 1, 128], strides = [1, 1, 1]} : vector<1x8x128xf32> to vector<1x1x128xf32>
    %87 = vector.broadcast %85 : vector<1x8x1xf32> to vector<1x8x128xf32>
    %88 = vector.broadcast %86 : vector<1x1x128xf32> to vector<1x8x128xf32>
    %89 = arith.mulf %87, %88 : vector<1x8x128xf32>
    %90 = arith.addf %84, %89 : vector<1x8x128xf32>
    %91 = vector.extract_strided_slice %1 {offsets = [0, 0, 4], sizes = [1, 8, 1], strides = [1, 1, 1]} : vector<1x8x8xf32> to vector<1x8x1xf32>
    %92 = vector.extract_strided_slice %65 {offsets = [0, 4, 0], sizes = [1, 1, 128], strides = [1, 1, 1]} : vector<1x8x128xf32> to vector<1x1x128xf32>
    %93 = vector.broadcast %91 : vector<1x8x1xf32> to vector<1x8x128xf32>
    %94 = vector.broadcast %92 : vector<1x1x128xf32> to vector<1x8x128xf32>
    %95 = arith.mulf %93, %94 : vector<1x8x128xf32>
    %96 = arith.addf %90, %95 : vector<1x8x128xf32>
    %97 = vector.extract_strided_slice %1 {offsets = [0, 0, 5], sizes = [1, 8, 1], strides = [1, 1, 1]} : vector<1x8x8xf32> to vector<1x8x1xf32>
    %98 = vector.extract_strided_slice %65 {offsets = [0, 5, 0], sizes = [1, 1, 128], strides = [1, 1, 1]} : vector<1x8x128xf32> to vector<1x1x128xf32>
    %99 = vector.broadcast %97 : vector<1x8x1xf32> to vector<1x8x128xf32>
    %100 = vector.broadcast %98 : vector<1x1x128xf32> to vector<1x8x128xf32>
    %101 = arith.mulf %99, %100 : vector<1x8x128xf32>
    %102 = arith.addf %96, %101 : vector<1x8x128xf32>
    %103 = vector.extract_strided_slice %1 {offsets = [0, 0, 6], sizes = [1, 8, 1], strides = [1, 1, 1]} : vector<1x8x8xf32> to vector<1x8x1xf32>
    %104 = vector.extract_strided_slice %65 {offsets = [0, 6, 0], sizes = [1, 1, 128], strides = [1, 1, 1]} : vector<1x8x128xf32> to vector<1x1x128xf32>
    %105 = vector.broadcast %103 : vector<1x8x1xf32> to vector<1x8x128xf32>
    %106 = vector.broadcast %104 : vector<1x1x128xf32> to vector<1x8x128xf32>
    %107 = arith.mulf %105, %106 : vector<1x8x128xf32>
    %108 = arith.addf %102, %107 : vector<1x8x128xf32>
    %109 = vector.extract_strided_slice %1 {offsets = [0, 0, 7], sizes = [1, 8, 1], strides = [1, 1, 1]} : vector<1x8x8xf32> to vector<1x8x1xf32>
    %110 = vector.extract_strided_slice %65 {offsets = [0, 7, 0], sizes = [1, 1, 128], strides = [1, 1, 1]} : vector<1x8x128xf32> to vector<1x1x128xf32>
    %111 = vector.broadcast %109 : vector<1x8x1xf32> to vector<1x8x128xf32>
    %112 = vector.broadcast %110 : vector<1x1x128xf32> to vector<1x8x128xf32>
    %113 = arith.mulf %111, %112 : vector<1x8x128xf32>
    %114 = arith.addf %108, %113 : vector<1x8x128xf32>
    %115 = vector.shape_cast %114 : vector<1x8x128xf32> to vector<8x128xf32>
    %116 = tpu.concatenate %64, %115 in 1 : vector<8x128xf32>, vector<8x128xf32> -> vector<8x256xf32>
    %cst_18 = arith.constant dense<0.000000e+00> : vector<8x384xf32>
    %117 = tpu.matmul %116, %4, %cst_18 {dimension_numbers = #tpu.dot_dimension_numbers<[1], [0], [0], [1], [0, 0, 1, 1], [], []>} : vector<8x256xf32>, vector<256x384xf32>, vector<8x384xf32> -> vector<8x384xf32>
    %118 = vector.broadcast %5 : vector<1x384xf32> to vector<8x384xf32>
    %119 = arith.addf %117, %118 : vector<8x384xf32>
    %120 = vector.extract_strided_slice %119 {offsets = [0, 0], sizes = [8, 128], strides = [1, 1]} : vector<8x384xf32> to vector<8x128xf32>
    %121 = vector.extract_strided_slice %119 {offsets = [0, 128], sizes = [8, 128], strides = [1, 1]} : vector<8x384xf32> to vector<8x128xf32>
    %122 = vector.extract_strided_slice %119 {offsets = [0, 256], sizes = [8, 128], strides = [1, 1]} : vector<8x384xf32> to vector<8x128xf32>
    %123 = vector.extract_strided_slice %13 {offsets = [0, 0], sizes = [8, 128], strides = [1, 1]} : vector<8x384xf32> to vector<8x128xf32>
    %124 = vector.extract_strided_slice %13 {offsets = [0, 128], sizes = [8, 128], strides = [1, 1]} : vector<8x384xf32> to vector<8x128xf32>
    %125 = vector.extract_strided_slice %13 {offsets = [0, 256], sizes = [8, 128], strides = [1, 1]} : vector<8x384xf32> to vector<8x128xf32>
    %126 = arith.addf %120, %123 : vector<8x128xf32>
    %127 = arith.negf %126 : vector<8x128xf32>
    %128 = math.exp %127 : vector<8x128xf32>
    %cst_19 = arith.constant 1.000000e+00 : f32
    %129 = vector.broadcast %cst_19 : f32 to vector<8x128xf32>
    %130 = arith.addf %129, %128 : vector<8x128xf32>
    %131 = arith.divf %129, %130 : vector<8x128xf32>
    %132 = arith.addf %121, %124 : vector<8x128xf32>
    %133 = arith.negf %132 : vector<8x128xf32>
    %134 = math.exp %133 : vector<8x128xf32>
    %cst_20 = arith.constant 1.000000e+00 : f32
    %135 = vector.broadcast %cst_20 : f32 to vector<8x128xf32>
    %136 = arith.addf %135, %134 : vector<8x128xf32>
    %137 = arith.divf %135, %136 : vector<8x128xf32>
    %138 = arith.mulf %131, %125 : vector<8x128xf32>
    %139 = arith.addf %122, %138 : vector<8x128xf32>
    %140 = math.tanh %139 : vector<8x128xf32>
    %141 = arith.subf %7, %140 : vector<8x128xf32>
    %142 = arith.mulf %137, %141 : vector<8x128xf32>
    %143 = arith.addf %140, %142 : vector<8x128xf32>
    %cst_21 = arith.constant dense<0.000000e+00> : vector<8x640xf32>
    %144 = tpu.matmul %143, %2, %cst_21 {dimension_numbers = #tpu.dot_dimension_numbers<[1], [0], [0], [1], [0, 0, 1, 1], [], []>} : vector<8x128xf32>, vector<128x640xf32>, vector<8x640xf32> -> vector<8x640xf32>
    %145 = vector.broadcast %3 : vector<1x640xf32> to vector<8x640xf32>
    %146 = arith.addf %144, %145 : vector<8x640xf32>
    %147 = vector.extract_strided_slice %146 {offsets = [0, 0], sizes = [8, 128], strides = [1, 1]} : vector<8x640xf32> to vector<8x128xf32>
    %148 = vector.extract_strided_slice %146 {offsets = [0, 128], sizes = [8, 128], strides = [1, 1]} : vector<8x640xf32> to vector<8x128xf32>
    %149 = vector.extract_strided_slice %146 {offsets = [0, 256], sizes = [8, 384], strides = [1, 1]} : vector<8x640xf32> to vector<8x384xf32>
    %150 = vector.shape_cast %147 : vector<8x128xf32> to vector<1x8x128xf32>
    %cst_22 = arith.constant 0.000000e+00 : f32
    %151 = vector.broadcast %cst_22 : f32 to vector<1x8x128xf32>
    %152 = vector.extract_strided_slice %0 {offsets = [0, 0, 0], sizes = [1, 8, 1], strides = [1, 1, 1]} : vector<1x8x8xf32> to vector<1x8x1xf32>
    %153 = vector.extract_strided_slice %150 {offsets = [0, 0, 0], sizes = [1, 1, 128], strides = [1, 1, 1]} : vector<1x8x128xf32> to vector<1x1x128xf32>
    %154 = vector.broadcast %152 : vector<1x8x1xf32> to vector<1x8x128xf32>
    %155 = vector.broadcast %153 : vector<1x1x128xf32> to vector<1x8x128xf32>
    %156 = arith.mulf %154, %155 : vector<1x8x128xf32>
    %157 = arith.addf %151, %156 : vector<1x8x128xf32>
    %158 = vector.extract_strided_slice %0 {offsets = [0, 0, 1], sizes = [1, 8, 1], strides = [1, 1, 1]} : vector<1x8x8xf32> to vector<1x8x1xf32>
    %159 = vector.extract_strided_slice %150 {offsets = [0, 1, 0], sizes = [1, 1, 128], strides = [1, 1, 1]} : vector<1x8x128xf32> to vector<1x1x128xf32>
    %160 = vector.broadcast %158 : vector<1x8x1xf32> to vector<1x8x128xf32>
    %161 = vector.broadcast %159 : vector<1x1x128xf32> to vector<1x8x128xf32>
    %162 = arith.mulf %160, %161 : vector<1x8x128xf32>
    %163 = arith.addf %157, %162 : vector<1x8x128xf32>
    %164 = vector.extract_strided_slice %0 {offsets = [0, 0, 2], sizes = [1, 8, 1], strides = [1, 1, 1]} : vector<1x8x8xf32> to vector<1x8x1xf32>
    %165 = vector.extract_strided_slice %150 {offsets = [0, 2, 0], sizes = [1, 1, 128], strides = [1, 1, 1]} : vector<1x8x128xf32> to vector<1x1x128xf32>
    %166 = vector.broadcast %164 : vector<1x8x1xf32> to vector<1x8x128xf32>
    %167 = vector.broadcast %165 : vector<1x1x128xf32> to vector<1x8x128xf32>
    %168 = arith.mulf %166, %167 : vector<1x8x128xf32>
    %169 = arith.addf %163, %168 : vector<1x8x128xf32>
    %170 = vector.extract_strided_slice %0 {offsets = [0, 0, 3], sizes = [1, 8, 1], strides = [1, 1, 1]} : vector<1x8x8xf32> to vector<1x8x1xf32>
    %171 = vector.extract_strided_slice %150 {offsets = [0, 3, 0], sizes = [1, 1, 128], strides = [1, 1, 1]} : vector<1x8x128xf32> to vector<1x1x128xf32>
    %172 = vector.broadcast %170 : vector<1x8x1xf32> to vector<1x8x128xf32>
    %173 = vector.broadcast %171 : vector<1x1x128xf32> to vector<1x8x128xf32>
    %174 = arith.mulf %172, %173 : vector<1x8x128xf32>
    %175 = arith.addf %169, %174 : vector<1x8x128xf32>
    %176 = vector.extract_strided_slice %0 {offsets = [0, 0, 4], sizes = [1, 8, 1], strides = [1, 1, 1]} : vector<1x8x8xf32> to vector<1x8x1xf32>
    %177 = vector.extract_strided_slice %150 {offsets = [0, 4, 0], sizes = [1, 1, 128], strides = [1, 1, 1]} : vector<1x8x128xf32> to vector<1x1x128xf32>
    %178 = vector.broadcast %176 : vector<1x8x1xf32> to vector<1x8x128xf32>
    %179 = vector.broadcast %177 : vector<1x1x128xf32> to vector<1x8x128xf32>
    %180 = arith.mulf %178, %179 : vector<1x8x128xf32>
    %181 = arith.addf %175, %180 : vector<1x8x128xf32>
    %182 = vector.extract_strided_slice %0 {offsets = [0, 0, 5], sizes = [1, 8, 1], strides = [1, 1, 1]} : vector<1x8x8xf32> to vector<1x8x1xf32>
    %183 = vector.extract_strided_slice %150 {offsets = [0, 5, 0], sizes = [1, 1, 128], strides = [1, 1, 1]} : vector<1x8x128xf32> to vector<1x1x128xf32>
    %184 = vector.broadcast %182 : vector<1x8x1xf32> to vector<1x8x128xf32>
    %185 = vector.broadcast %183 : vector<1x1x128xf32> to vector<1x8x128xf32>
    %186 = arith.mulf %184, %185 : vector<1x8x128xf32>
    %187 = arith.addf %181, %186 : vector<1x8x128xf32>
    %188 = vector.extract_strided_slice %0 {offsets = [0, 0, 6], sizes = [1, 8, 1], strides = [1, 1, 1]} : vector<1x8x8xf32> to vector<1x8x1xf32>
    %189 = vector.extract_strided_slice %150 {offsets = [0, 6, 0], sizes = [1, 1, 128], strides = [1, 1, 1]} : vector<1x8x128xf32> to vector<1x1x128xf32>
    %190 = vector.broadcast %188 : vector<1x8x1xf32> to vector<1x8x128xf32>
    %191 = vector.broadcast %189 : vector<1x1x128xf32> to vector<1x8x128xf32>
    %192 = arith.mulf %190, %191 : vector<1x8x128xf32>
    %193 = arith.addf %187, %192 : vector<1x8x128xf32>
    %194 = vector.extract_strided_slice %0 {offsets = [0, 0, 7], sizes = [1, 8, 1], strides = [1, 1, 1]} : vector<1x8x8xf32> to vector<1x8x1xf32>
    %195 = vector.extract_strided_slice %150 {offsets = [0, 7, 0], sizes = [1, 1, 128], strides = [1, 1, 1]} : vector<1x8x128xf32> to vector<1x1x128xf32>
    %196 = vector.broadcast %194 : vector<1x8x1xf32> to vector<1x8x128xf32>
    %197 = vector.broadcast %195 : vector<1x1x128xf32> to vector<1x8x128xf32>
    %198 = arith.mulf %196, %197 : vector<1x8x128xf32>
    %199 = arith.addf %193, %198 : vector<1x8x128xf32>
    %200 = vector.shape_cast %199 : vector<1x8x128xf32> to vector<8x128xf32>
    %201 = vector.shape_cast %148 : vector<8x128xf32> to vector<1x8x128xf32>
    %cst_23 = arith.constant 0.000000e+00 : f32
    %202 = vector.broadcast %cst_23 : f32 to vector<1x8x128xf32>
    %203 = vector.extract_strided_slice %1 {offsets = [0, 0, 0], sizes = [1, 8, 1], strides = [1, 1, 1]} : vector<1x8x8xf32> to vector<1x8x1xf32>
    %204 = vector.extract_strided_slice %201 {offsets = [0, 0, 0], sizes = [1, 1, 128], strides = [1, 1, 1]} : vector<1x8x128xf32> to vector<1x1x128xf32>
    %205 = vector.broadcast %203 : vector<1x8x1xf32> to vector<1x8x128xf32>
    %206 = vector.broadcast %204 : vector<1x1x128xf32> to vector<1x8x128xf32>
    %207 = arith.mulf %205, %206 : vector<1x8x128xf32>
    %208 = arith.addf %202, %207 : vector<1x8x128xf32>
    %209 = vector.extract_strided_slice %1 {offsets = [0, 0, 1], sizes = [1, 8, 1], strides = [1, 1, 1]} : vector<1x8x8xf32> to vector<1x8x1xf32>
    %210 = vector.extract_strided_slice %201 {offsets = [0, 1, 0], sizes = [1, 1, 128], strides = [1, 1, 1]} : vector<1x8x128xf32> to vector<1x1x128xf32>
    %211 = vector.broadcast %209 : vector<1x8x1xf32> to vector<1x8x128xf32>
    %212 = vector.broadcast %210 : vector<1x1x128xf32> to vector<1x8x128xf32>
    %213 = arith.mulf %211, %212 : vector<1x8x128xf32>
    %214 = arith.addf %208, %213 : vector<1x8x128xf32>
    %215 = vector.extract_strided_slice %1 {offsets = [0, 0, 2], sizes = [1, 8, 1], strides = [1, 1, 1]} : vector<1x8x8xf32> to vector<1x8x1xf32>
    %216 = vector.extract_strided_slice %201 {offsets = [0, 2, 0], sizes = [1, 1, 128], strides = [1, 1, 1]} : vector<1x8x128xf32> to vector<1x1x128xf32>
    %217 = vector.broadcast %215 : vector<1x8x1xf32> to vector<1x8x128xf32>
    %218 = vector.broadcast %216 : vector<1x1x128xf32> to vector<1x8x128xf32>
    %219 = arith.mulf %217, %218 : vector<1x8x128xf32>
    %220 = arith.addf %214, %219 : vector<1x8x128xf32>
    %221 = vector.extract_strided_slice %1 {offsets = [0, 0, 3], sizes = [1, 8, 1], strides = [1, 1, 1]} : vector<1x8x8xf32> to vector<1x8x1xf32>
    %222 = vector.extract_strided_slice %201 {offsets = [0, 3, 0], sizes = [1, 1, 128], strides = [1, 1, 1]} : vector<1x8x128xf32> to vector<1x1x128xf32>
    %223 = vector.broadcast %221 : vector<1x8x1xf32> to vector<1x8x128xf32>
    %224 = vector.broadcast %222 : vector<1x1x128xf32> to vector<1x8x128xf32>
    %225 = arith.mulf %223, %224 : vector<1x8x128xf32>
    %226 = arith.addf %220, %225 : vector<1x8x128xf32>
    %227 = vector.extract_strided_slice %1 {offsets = [0, 0, 4], sizes = [1, 8, 1], strides = [1, 1, 1]} : vector<1x8x8xf32> to vector<1x8x1xf32>
    %228 = vector.extract_strided_slice %201 {offsets = [0, 4, 0], sizes = [1, 1, 128], strides = [1, 1, 1]} : vector<1x8x128xf32> to vector<1x1x128xf32>
    %229 = vector.broadcast %227 : vector<1x8x1xf32> to vector<1x8x128xf32>
    %230 = vector.broadcast %228 : vector<1x1x128xf32> to vector<1x8x128xf32>
    %231 = arith.mulf %229, %230 : vector<1x8x128xf32>
    %232 = arith.addf %226, %231 : vector<1x8x128xf32>
    %233 = vector.extract_strided_slice %1 {offsets = [0, 0, 5], sizes = [1, 8, 1], strides = [1, 1, 1]} : vector<1x8x8xf32> to vector<1x8x1xf32>
    %234 = vector.extract_strided_slice %201 {offsets = [0, 5, 0], sizes = [1, 1, 128], strides = [1, 1, 1]} : vector<1x8x128xf32> to vector<1x1x128xf32>
    %235 = vector.broadcast %233 : vector<1x8x1xf32> to vector<1x8x128xf32>
    %236 = vector.broadcast %234 : vector<1x1x128xf32> to vector<1x8x128xf32>
    %237 = arith.mulf %235, %236 : vector<1x8x128xf32>
    %238 = arith.addf %232, %237 : vector<1x8x128xf32>
    %239 = vector.extract_strided_slice %1 {offsets = [0, 0, 6], sizes = [1, 8, 1], strides = [1, 1, 1]} : vector<1x8x8xf32> to vector<1x8x1xf32>
    %240 = vector.extract_strided_slice %201 {offsets = [0, 6, 0], sizes = [1, 1, 128], strides = [1, 1, 1]} : vector<1x8x128xf32> to vector<1x1x128xf32>
    %241 = vector.broadcast %239 : vector<1x8x1xf32> to vector<1x8x128xf32>
    %242 = vector.broadcast %240 : vector<1x1x128xf32> to vector<1x8x128xf32>
    %243 = arith.mulf %241, %242 : vector<1x8x128xf32>
    %244 = arith.addf %238, %243 : vector<1x8x128xf32>
    %245 = vector.extract_strided_slice %1 {offsets = [0, 0, 7], sizes = [1, 8, 1], strides = [1, 1, 1]} : vector<1x8x8xf32> to vector<1x8x1xf32>
    %246 = vector.extract_strided_slice %201 {offsets = [0, 7, 0], sizes = [1, 1, 128], strides = [1, 1, 1]} : vector<1x8x128xf32> to vector<1x1x128xf32>
    %247 = vector.broadcast %245 : vector<1x8x1xf32> to vector<1x8x128xf32>
    %248 = vector.broadcast %246 : vector<1x1x128xf32> to vector<1x8x128xf32>
    %249 = arith.mulf %247, %248 : vector<1x8x128xf32>
    %250 = arith.addf %244, %249 : vector<1x8x128xf32>
    %251 = vector.shape_cast %250 : vector<1x8x128xf32> to vector<8x128xf32>
    %252 = tpu.concatenate %200, %251 in 1 : vector<8x128xf32>, vector<8x128xf32> -> vector<8x256xf32>
    %cst_24 = arith.constant dense<0.000000e+00> : vector<8x384xf32>
    %253 = tpu.matmul %252, %4, %cst_24 {dimension_numbers = #tpu.dot_dimension_numbers<[1], [0], [0], [1], [0, 0, 1, 1], [], []>} : vector<8x256xf32>, vector<256x384xf32>, vector<8x384xf32> -> vector<8x384xf32>
    %254 = vector.broadcast %5 : vector<1x384xf32> to vector<8x384xf32>
    %255 = arith.addf %253, %254 : vector<8x384xf32>
    %256 = vector.extract_strided_slice %255 {offsets = [0, 0], sizes = [8, 128], strides = [1, 1]} : vector<8x384xf32> to vector<8x128xf32>
    %257 = vector.extract_strided_slice %255 {offsets = [0, 128], sizes = [8, 128], strides = [1, 1]} : vector<8x384xf32> to vector<8x128xf32>
    %258 = vector.extract_strided_slice %255 {offsets = [0, 256], sizes = [8, 128], strides = [1, 1]} : vector<8x384xf32> to vector<8x128xf32>
    %259 = vector.extract_strided_slice %149 {offsets = [0, 0], sizes = [8, 128], strides = [1, 1]} : vector<8x384xf32> to vector<8x128xf32>
    %260 = vector.extract_strided_slice %149 {offsets = [0, 128], sizes = [8, 128], strides = [1, 1]} : vector<8x384xf32> to vector<8x128xf32>
    %261 = vector.extract_strided_slice %149 {offsets = [0, 256], sizes = [8, 128], strides = [1, 1]} : vector<8x384xf32> to vector<8x128xf32>
    %262 = arith.addf %256, %259 : vector<8x128xf32>
    %263 = arith.negf %262 : vector<8x128xf32>
    %264 = math.exp %263 : vector<8x128xf32>
    %cst_25 = arith.constant 1.000000e+00 : f32
    %265 = vector.broadcast %cst_25 : f32 to vector<8x128xf32>
    %266 = arith.addf %265, %264 : vector<8x128xf32>
    %267 = arith.divf %265, %266 : vector<8x128xf32>
    %268 = arith.addf %257, %260 : vector<8x128xf32>
    %269 = arith.negf %268 : vector<8x128xf32>
    %270 = math.exp %269 : vector<8x128xf32>
    %cst_26 = arith.constant 1.000000e+00 : f32
    %271 = vector.broadcast %cst_26 : f32 to vector<8x128xf32>
    %272 = arith.addf %271, %270 : vector<8x128xf32>
    %273 = arith.divf %271, %272 : vector<8x128xf32>
    %274 = arith.mulf %267, %261 : vector<8x128xf32>
    %275 = arith.addf %258, %274 : vector<8x128xf32>
    %276 = math.tanh %275 : vector<8x128xf32>
    %277 = arith.subf %143, %276 : vector<8x128xf32>
    %278 = arith.mulf %273, %277 : vector<8x128xf32>
    %279 = arith.addf %276, %278 : vector<8x128xf32>
    %280 = vector.shape_cast %279 : vector<8x128xf32> to vector<1x8x128xf32>
    %c0_27 = arith.constant 0 : index
    %c0_28 = arith.constant 0 : index
    %c0_29 = arith.constant 0 : index
    %281 = vector.load %arg8[%c0_27, %c0_28, %c0_29] : memref<1x8x128xf32, #tpu.memory_space<vmem>>, vector<1x8x128xf32>
    tpu.vector_store %arg8[%c0_27, %c0_28, %c0_29], %280 {strides = array<i32>} : memref<1x8x128xf32, #tpu.memory_space<vmem>>, vector<1x8x128xf32>,
    return
  }
  func.func @transform_0(%arg0: i32) -> (i32, i32, i32) {
    %c0_i32 = arith.constant 0 : i32
    %c0_i32_0 = arith.constant 0 : i32
    %c0_i32_1 = arith.constant 0 : i32
    return %arg0, %c0_i32, %c0_i32_0 : i32, i32, i32
  }
  func.func @transform_1(%arg0: i32) -> (i32, i32, i32) {
    %c0_i32 = arith.constant 0 : i32
    %c0_i32_0 = arith.constant 0 : i32
    %c0_i32_1 = arith.constant 0 : i32
    return %arg0, %c0_i32, %c0_i32_0 : i32, i32, i32
  }
  func.func @transform_2(%arg0: i32) -> (i32, i32, i32) {
    %c0_i32 = arith.constant 0 : i32
    %c0_i32_0 = arith.constant 0 : i32
    %c0_i32_1 = arith.constant 0 : i32
    return %arg0, %c0_i32, %c0_i32_0 : i32, i32, i32
  }
  func.func @transform_3(%arg0: i32) -> (i32, i32) {
    %c0_i32 = arith.constant 0 : i32
    %c0_i32_0 = arith.constant 0 : i32
    %c0_i32_1 = arith.constant 0 : i32
    return %c0_i32, %c0_i32_0 : i32, i32
  }
  func.func @transform_4(%arg0: i32) -> (i32, i32) {
    %c0_i32 = arith.constant 0 : i32
    %c0_i32_0 = arith.constant 0 : i32
    %c0_i32_1 = arith.constant 0 : i32
    return %c0_i32, %c0_i32_0 : i32, i32
  }
  func.func @transform_5(%arg0: i32) -> (i32, i32) {
    %c0_i32 = arith.constant 0 : i32
    %c0_i32_0 = arith.constant 0 : i32
    %c0_i32_1 = arith.constant 0 : i32
    return %c0_i32, %c0_i32_0 : i32, i32
  }
  func.func @transform_6(%arg0: i32) -> (i32, i32) {
    %c0_i32 = arith.constant 0 : i32
    %c0_i32_0 = arith.constant 0 : i32
    %c0_i32_1 = arith.constant 0 : i32
    return %c0_i32, %c0_i32_0 : i32, i32
  }
  func.func @transform_7(%arg0: i32) -> (i32, i32, i32) {
    %c0_i32 = arith.constant 0 : i32
    %c0_i32_0 = arith.constant 0 : i32
    %c0_i32_1 = arith.constant 0 : i32
    return %arg0, %c0_i32, %c0_i32_0 : i32, i32, i32
  }
}

</mosaic_0001>

<llo_original>
// kernel: tpu_custom_call.1
$region0: #{tpu_custom_call.1}
  #allocation0 [shape = 'u32[]', space=smem, size = 0x4, offset = 0x4, fixed_abs, tag = 'smem constant byte address 0x4 - core index']
  #allocation1 [shape = 'u32[144,128]{1,0:T(1,128)}', space=vmem, size = 0x12000, scoped, tag = 'internal scratch']
  %s0 = inlined_call_operand.hbm [shape: f32[2,8,8], index: 0, kind: input, shape index: {}]
  %s1 = inlined_call_operand.hbm [shape: f32[2,8,8], index: 1, kind: input, shape index: {}]
  %s2 = inlined_call_operand.hbm [shape: f32[2,8,128], index: 2, kind: input, shape index: {}]
  %s3 = inlined_call_operand.hbm [shape: f32[128,640], index: 3, kind: input, shape index: {}]
  %s4 = inlined_call_operand.vmem [shape: f32[1,640], index: 4, kind: input, shape index: {}]
  %s5 = inlined_call_operand.hbm [shape: f32[256,384], index: 5, kind: input, shape index: {}]
  %s6 = inlined_call_operand.vmem [shape: f32[1,384], index: 6, kind: input, shape index: {}]
  %s7 = inlined_call_operand.hbm [shape: f32[2,8,128], index: 7, kind: output, shape index: {}]
  %s8 = sld [smem:[#allocation0]]
  $region81: #{tpu_custom_call.1} parent=0
    _
  %s10 = ssub.s32 1, %s8
  %s11 = scalar_select 0, %s10, %s8
  $region1: #{tpu_custom_call.1} parent=0
    #allocation2 [shape = 'u8[8192]{0}', space=vmem, size = 0x2000, scoped, tag = 'input window, operand 0']
    #allocation3 [shape = 's32[2]{0}', space=sflag, size = 0x8, scoped, tag = 'scoped memory for tpu_custom_call.1']
    #allocation4 [shape = 's32[2]{0}', space=sflag, size = 0x8, scoped, tag = 'scoped memory for tpu_custom_call.1']
    #allocation5 [shape = 'u8[8192]{0}', space=vmem, size = 0x2000, scoped, tag = 'input window, operand 1']
    #allocation6 [shape = 's32[2]{0}', space=sflag, size = 0x8, scoped, tag = 'scoped memory for tpu_custom_call.1']
    #allocation7 [shape = 'u8[8192]{0}', space=vmem, size = 0x2000, scoped, tag = 'input window, operand 2']
    #allocation8 [shape = 'u8[327680]{0}', space=vmem, size = 0x50000, scoped, tag = 'input window, operand 3, single buffered']
    #allocation9 [shape = 's32[1]{0}', space=sflag, size = 0x4, scoped, tag = 'scoped memory for tpu_custom_call.1']
    #allocation10 [shape = 'u8[393216]{0}', space=vmem, size = 0x60000, scoped, tag = 'input window, operand 5, single buffered']
    #allocation11 [shape = 'u8[8192]{0}', space=vmem, size = 0x2000, scoped, tag = 'output window, operand 0']
    %12 = vsyncpa [#allocation3], 0
    %s13 = scalar_lea.sflag [#allocation3], 1
    %14 = vsyncpa %s13, 0
    %15 = vsyncpa [#allocation6], 0
    %s16 = scalar_lea.sflag [#allocation6], 1
    %17 = vsyncpa %s16, 0
    %18 = vsyncpa [#allocation9], 0
    %19 = vsyncpa [#allocation4], 0
    %s20 = scalar_lea.sflag [#allocation4], 1
    %21 = vsyncpa %s20, 0
    loop: start=0, step=1, limit=4
    $region2: #{tpu_custom_call.1} parent=1 // loop_pre_header
      _
    $region3: #{tpu_custom_call.1} parent=1 // loop_header
      %s23 = sphi 0, %s27
      %p24 = scmp.ge.s32.totalorder %s23, 4
      %s33 = sphi 0, %s35
      %s36 = sphi 0, %s33
      %s37 = sphi 0, %s36
      %s53 = sphi 0, %s37
      %s59 = sphi 0, %s61
      %s62 = sphi 0, %s59
      %s63 = sphi 0, %s62
      %s79 = sphi 0, %s63
      %s85 = sphi 0, %s87
      %s88 = sphi 0, %s85
      %s89 = sphi 0, %s88
      %s105 = sphi 0, %s89
      %s109 = sphi 0, %s109
      %s111 = sphi 0, %s109
      %s112 = sphi 0, %s111
      %s126 = sphi 0, %s112
      %s130 = sphi 0, %s130
      %s132 = sphi 0, %s130
      %s133 = sphi 0, %s132
      %s147 = sphi 0, %s133
      %s151 = sphi 0, %s151
      %s153 = sphi 0, %s151
      %s154 = sphi 0, %s153
      %s168 = sphi 0, %s154
      %s172 = sphi 0, %s172
      %s174 = sphi 0, %s172
      %s175 = sphi 0, %s174
      %s189 = sphi 0, %s175
      %s195 = sphi 0, %s197
      %s198 = sphi 0, %s195
      %s199 = sphi 0, %s198
      %s215 = sphi 0, %s199
    $region4: #{tpu_custom_call.1} parent=1 // loop_header_branch
      %26 = sbr.rel (%p24) target = $region8
    $region5: #{tpu_custom_call.1} parent=1 // loop_body
      %s28 = ssub.s32 %s23, 1
      %s29 = ssub.s32 %s23, 2
      %s30 = sadd.s32 %s23, 1
      %s31 = ssub.s32 %s23, %s30
      %p32 = scmp.eq.s32.totalorder %s31, 0
      %s34 = sadd.s32 %s33, 1
      %s35 = scalar_select %p32, %s33, %s34
      %p38 = pneg %p32
      %p39 = scmp.eq.s32.totalorder %s23, 1
      %p40 = por %p38, %p39
      %p41 = scmp.ne.s32.totalorder %s33, %s36
      %p42 = scmp.eq.s32.totalorder %s23, 0
      %p43 = por %p41, %p42
      %p44 = scmp.ne.s32.totalorder %s33, %s36
      %p45 = scmp.eq.s32.totalorder %s28, 1
      %p46 = por %p44, %p45
      %p47 = scmp.ne.s32.totalorder %s36, %s37
      %p48 = scmp.eq.s32.totalorder %s28, 0
      %p49 = por %p47, %p48
      %p50 = scmp.ne.s32.totalorder %s36, %s37
      %p51 = scmp.eq.s32.totalorder %s29, 1
      %p52 = por %p50, %p51
      %p54 = scmp.ne.s32.totalorder %s37, %s53
      %p55 = scmp.eq.s32.totalorder %s29, 0
      %p56 = por %p54, %p55
      %s57 = ssub.s32 %s23, %s30
      %p58 = scmp.eq.s32.totalorder %s57, 0
      %s60 = sadd.s32 %s59, 1
      %s61 = scalar_select %p58, %s59, %s60
      %p64 = pneg %p58
      %p65 = scmp.eq.s32.totalorder %s23, 1
      %p66 = por %p64, %p65
      %p67 = scmp.ne.s32.totalorder %s59, %s62
      %p68 = scmp.eq.s32.totalorder %s23, 0
      %p69 = por %p67, %p68
      %p70 = scmp.ne.s32.totalorder %s59, %s62
      %p71 = scmp.eq.s32.totalorder %s28, 1
      %p72 = por %p70, %p71
      %p73 = scmp.ne.s32.totalorder %s62, %s63
      %p74 = scmp.eq.s32.totalorder %s28, 0
      %p75 = por %p73, %p74
      %p76 = scmp.ne.s32.totalorder %s62, %s63
      %p77 = scmp.eq.s32.totalorder %s29, 1
      %p78 = por %p76, %p77
      %p80 = scmp.ne.s32.totalorder %s63, %s79
      %p81 = scmp.eq.s32.totalorder %s29, 0
      %p82 = por %p80, %p81
      %s83 = ssub.s32 %s23, %s30
      %p84 = scmp.eq.s32.totalorder %s83, 0
      %s86 = sadd.s32 %s85, 1
      %s87 = scalar_select %p84, %s85, %s86
      %p90 = pneg %p84
      %p91 = scmp.eq.s32.totalorder %s23, 1
      %p92 = por %p90, %p91
      %p93 = scmp.ne.s32.totalorder %s85, %s88
      %p94 = scmp.eq.s32.totalorder %s23, 0
      %p95 = por %p93, %p94
      %p96 = scmp.ne.s32.totalorder %s85, %s88
      %p97 = scmp.eq.s32.totalorder %s28, 1
      %p98 = por %p96, %p97
      %p99 = scmp.ne.s32.totalorder %s88, %s89
      %p100 = scmp.eq.s32.totalorder %s28, 0
      %p101 = por %p99, %p100
      %p102 = scmp.ne.s32.totalorder %s88, %s89
      %p103 = scmp.eq.s32.totalorder %s29, 1
      %p104 = por %p102, %p103
      %p106 = scmp.ne.s32.totalorder %s89, %s105
      %p107 = scmp.eq.s32.totalorder %s29, 0
      %p108 = por %p106, %p107
      %s110 = sadd.s32 %s109, 1
      %p113 = scmp.eq.s32.totalorder %s23, 1
      %p114 = scmp.ne.s32.totalorder %s109, %s111
      %p115 = scmp.eq.s32.totalorder %s23, 0
      %p116 = por %p114, %p115
      %p117 = scmp.ne.s32.totalorder %s109, %s111
      %p118 = scmp.eq.s32.totalorder %s28, 1
      %p119 = por %p117, %p118
      %p120 = scmp.ne.s32.totalorder %s111, %s112
      %p121 = scmp.eq.s32.totalorder %s28, 0
      %p122 = por %p120, %p121
      %p123 = scmp.ne.s32.totalorder %s111, %s112
      %p124 = scmp.eq.s32.totalorder %s29, 1
      %p125 = por %p123, %p124
      %p127 = scmp.ne.s32.totalorder %s112, %s126
      %p128 = scmp.eq.s32.totalorder %s29, 0
      %p129 = por %p127, %p128
      %s131 = sadd.s32 %s130, 1
      %p134 = scmp.eq.s32.totalorder %s23, 1
      %p135 = scmp.ne.s32.totalorder %s130, %s132
      %p136 = scmp.eq.s32.totalorder %s23, 0
      %p137 = por %p135, %p136
      %p138 = scmp.ne.s32.totalorder %s130, %s132
      %p139 = scmp.eq.s32.totalorder %s28, 1
      %p140 = por %p138, %p139
      %p141 = scmp.ne.s32.totalorder %s132, %s133
      %p142 = scmp.eq.s32.totalorder %s28, 0
      %p143 = por %p141, %p142
      %p144 = scmp.ne.s32.totalorder %s132, %s133
      %p145 = scmp.eq.s32.totalorder %s29, 1
      %p146 = por %p144, %p145
      %p148 = scmp.ne.s32.totalorder %s133, %s147
      %p149 = scmp.eq.s32.totalorder %s29, 0
      %p150 = por %p148, %p149
      %s152 = sadd.s32 %s151, 1
      %p155 = scmp.eq.s32.totalorder %s23, 1
      %p156 = scmp.ne.s32.totalorder %s151, %s153
      %p157 = scmp.eq.s32.totalorder %s23, 0
      %p158 = por %p156, %p157
      %p159 = scmp.ne.s32.totalorder %s151, %s153
      %p160 = scmp.eq.s32.totalorder %s28, 1
      %p161 = por %p159, %p160
      %p162 = scmp.ne.s32.totalorder %s153, %s154
      %p163 = scmp.eq.s32.totalorder %s28, 0
      %p164 = por %p162, %p163
      %p165 = scmp.ne.s32.totalorder %s153, %s154
      %p166 = scmp.eq.s32.totalorder %s29, 1
      %p167 = por %p165, %p166
      %p169 = scmp.ne.s32.totalorder %s154, %s168
      %p170 = scmp.eq.s32.totalorder %s29, 0
      %p171 = por %p169, %p170
      %s173 = sadd.s32 %s172, 1
      %p176 = scmp.eq.s32.totalorder %s23, 1
      %p177 = scmp.ne.s32.totalorder %s172, %s174
      %p178 = scmp.eq.s32.totalorder %s23, 0
      %p179 = por %p177, %p178
      %p180 = scmp.ne.s32.totalorder %s172, %s174
      %p181 = scmp.eq.s32.totalorder %s28, 1
      %p182 = por %p180, %p181
      %p183 = scmp.ne.s32.totalorder %s174, %s175
      %p184 = scmp.eq.s32.totalorder %s28, 0
      %p185 = por %p183, %p184
      %p186 = scmp.ne.s32.totalorder %s174, %s175
      %p187 = scmp.eq.s32.totalorder %s29, 1
      %p188 = por %p186, %p187
      %p190 = scmp.ne.s32.totalorder %s175, %s189
      %p191 = scmp.eq.s32.totalorder %s29, 0
      %p192 = por %p190, %p191
      %s193 = ssub.s32 %s23, %s30
      %p194 = scmp.eq.s32.totalorder %s193, 0
      %s196 = sadd.s32 %s195, 1
      %s197 = scalar_select %p194, %s195, %s196
      %p200 = pneg %p194
      %p201 = scmp.eq.s32.totalorder %s23, 1
      %p202 = por %p200, %p201
      %p203 = scmp.ne.s32.totalorder %s195, %s198
      %p204 = scmp.eq.s32.totalorder %s23, 0
      %p205 = por %p203, %p204
      %p206 = scmp.ne.s32.totalorder %s195, %s198
      %p207 = scmp.eq.s32.totalorder %s28, 1
      %p208 = por %p206, %p207
      %p209 = scmp.ne.s32.totalorder %s198, %s199
      %p210 = scmp.eq.s32.totalorder %s28, 0
      %p211 = por %p209, %p210
      %p212 = scmp.ne.s32.totalorder %s198, %s199
      %p213 = scmp.eq.s32.totalorder %s29, 1
      %p214 = por %p212, %p213
      %p216 = scmp.ne.s32.totalorder %s199, %s215
      %p217 = scmp.eq.s32.totalorder %s29, 0
      %p218 = por %p216, %p217
      %p219 = scmp.le.s32.totalorder 1, %s23
      %p220 = scmp.lt.s32.totalorder %s23, 3
      %p221 = pnand %p219, %p220
      %p222 = pneg %p221
      // Predicated region
      $region9: #{tpu_custom_call.1} parent=5 // pred_check
        _
      $region10: #{tpu_custom_call.1} parent=5 // pred_check_branch
        %224 = sbr.rel (%p221) target = $region12
      $region11: #{tpu_custom_call.1} parent=5 // pred_region
        %s225 = ssub.s32 %s23, 1
        // Predicated region
        $region13: #{tpu_custom_call.1} parent=11 // pred_check
          %p226 = pneg %p122
        $region14: #{tpu_custom_call.1} parent=11 // pred_check_branch
          %228 = sbr.rel (%p226) target = $region16
        $region15: #{tpu_custom_call.1} parent=11 // pred_region
          %s230 = ssub.s32 10240, 10240
          %231 = vsyncadd [#allocation9], %s230
          %s232 = sshll.u32 [#allocation8], 4
          %s233 = int_to_ptr.vmem [resolvable:$true] %s232
          %238 = dma.hbm_to_vmem [thread:$0]  %s3, 10240, %s233, [#allocation9], 640, 640, 40
        $region16: #{tpu_custom_call.1} parent=11 // pred_fallthru
          _
        // Predicated region
        $region17: #{tpu_custom_call.1} parent=11 // pred_check
          %p239 = pneg %p143
        $region18: #{tpu_custom_call.1} parent=11 // pred_check_branch
          %241 = sbr.rel (%p239) target = $region20
        $region19: #{tpu_custom_call.1} parent=11 // pred_region
          _
        $region20: #{tpu_custom_call.1} parent=11 // pred_fallthru
          _
        // Predicated region
        $region21: #{tpu_custom_call.1} parent=11 // pred_check
          %p242 = pneg %p164
        $region22: #{tpu_custom_call.1} parent=11 // pred_check_branch
          %244 = sbr.rel (%p242) target = $region24
        $region23: #{tpu_custom_call.1} parent=11 // pred_region
          %s246 = ssub.s32 12288, 12288
          %247 = vsyncadd [#allocation9], %s246
          %s248 = sshll.u32 [#allocation10], 4
          %s249 = int_to_ptr.vmem [resolvable:$true] %s248
          %254 = dma.hbm_to_vmem [thread:$0]  %s5, 12288, %s249, [#allocation9], 384, 384, 24
        $region24: #{tpu_custom_call.1} parent=11 // pred_fallthru
          _
        // Predicated region
        $region25: #{tpu_custom_call.1} parent=11 // pred_check
          %p255 = pneg %p185
        $region26: #{tpu_custom_call.1} parent=11 // pred_check_branch
          %257 = sbr.rel (%p255) target = $region28
        $region27: #{tpu_custom_call.1} parent=11 // pred_region
          _
        $region28: #{tpu_custom_call.1} parent=11 // pred_fallthru
          _
      $region12: #{tpu_custom_call.1} parent=5 // pred_fallthru
        _
      %p258 = scmp.lt.s32.totalorder %s23, 2
      // Predicated region
      $region29: #{tpu_custom_call.1} parent=5 // pred_check
        %p259 = pneg %p258
      $region30: #{tpu_custom_call.1} parent=5 // pred_check_branch
        %261 = sbr.rel (%p259) target = $region32
      $region31: #{tpu_custom_call.1} parent=5 // pred_region
        // Predicated region
        $region33: #{tpu_custom_call.1} parent=31 // pred_check
          %p262 = pneg %p43
        $region34: #{tpu_custom_call.1} parent=31 // pred_check_branch
          %264 = sbr.rel (%p262) target = $region36
        $region35: #{tpu_custom_call.1} parent=31 // pred_region
          %s265 = sand.u32 %s33, 1
          %s266 = scalar_lea.sflag [#allocation3], %s265
          %s267 = sand.u32 %s33, 1
          %s268 = smul.addr %s267, 8
          %s269 = scalar_lea.vmem [#allocation2], %s268
          %s271 = ssub.s32 128, 128
          %272 = vsyncadd %s266, %s271
          %s273 = smul.addr %s23, 128
          %s274 = scalar_lea.hbm %s0, %s273
          %s276 = sshll.u32 %s269, 4
          %s277 = int_to_ptr.vmem [resolvable:$true] %s276
          %279 = dma.hbm_to_vmem [thread:$0]  %s274, 128, %s277, %s266
        $region36: #{tpu_custom_call.1} parent=31 // pred_fallthru
          _
        // Predicated region
        $region37: #{tpu_custom_call.1} parent=31 // pred_check
          %p280 = pneg %p69
        $region38: #{tpu_custom_call.1} parent=31 // pred_check_branch
          %282 = sbr.rel (%p280) target = $region40
        $region39: #{tpu_custom_call.1} parent=31 // pred_region
          %s283 = sand.u32 %s23, 1
          %s284 = scalar_lea.sflag [#allocation6], %s283
          %s285 = sand.u32 %s59, 1
          %s286 = smul.addr %s285, 8
          %s287 = scalar_lea.vmem [#allocation5], %s286
          %s289 = ssub.s32 128, 128
          %290 = vsyncadd %s284, %s289
          %s291 = smul.addr %s23, 128
          %s292 = scalar_lea.hbm %s1, %s291
          %s294 = sshll.u32 %s287, 4
          %s295 = int_to_ptr.vmem [resolvable:$true] %s294
          %297 = dma.hbm_to_vmem [thread:$0]  %s292, 128, %s295, %s284
        $region40: #{tpu_custom_call.1} parent=31 // pred_fallthru
          _
        // Predicated region
        $region41: #{tpu_custom_call.1} parent=31 // pred_check
          %p298 = pneg %p95
        $region42: #{tpu_custom_call.1} parent=31 // pred_check_branch
          %300 = sbr.rel (%p298) target = $region44
        $region43: #{tpu_custom_call.1} parent=31 // pred_region
          %s301 = sand.u32 %s23, 1
          %s302 = scalar_lea.sflag [#allocation6], %s301
          %s303 = sand.u32 %s85, 1
          %s304 = smul.addr %s303, 8
          %s305 = scalar_lea.vmem [#allocation7], %s304
          %s307 = ssub.s32 128, 128
          %308 = vsyncadd %s302, %s307
          %s309 = smul.addr %s23, 128
          %s310 = scalar_lea.hbm %s2, %s309
          %s312 = sshll.u32 %s305, 4
          %s313 = int_to_ptr.vmem [resolvable:$true] %s312
          %315 = dma.hbm_to_vmem [thread:$0]  %s310, 128, %s313, %s302
        $region44: #{tpu_custom_call.1} parent=31 // pred_fallthru
          _
      $region32: #{tpu_custom_call.1} parent=5 // pred_fallthru
        _
      %p316 = scmp.le.s32.totalorder 1, %s23
      %p317 = scmp.lt.s32.totalorder %s23, 3
      %p318 = pnand %p316, %p317
      %p319 = pneg %p318
      // Predicated region
      $region45: #{tpu_custom_call.1} parent=5 // pred_check
        _
      $region46: #{tpu_custom_call.1} parent=5 // pred_check_branch
        %321 = sbr.rel (%p318) target = $region48
      $region47: #{tpu_custom_call.1} parent=5 // pred_region
        %s322 = ssub.s32 %s23, 1
        %s323 = sand.u32 %s36, 1
        %s324 = scalar_lea.sflag [#allocation3], %s323
        %s325 = sand.u32 %s36, 1
        %s326 = smul.addr %s325, 8
        %s327 = scalar_lea.vmem [#allocation2], %s326
        // Predicated region
        $region49: #{tpu_custom_call.1} parent=47 // pred_check
          %p328 = pneg %p49
        $region50: #{tpu_custom_call.1} parent=47 // pred_check_branch
          %330 = sbr.rel (%p328) target = $region52
        $region51: #{tpu_custom_call.1} parent=47 // pred_region
          %331 = dma.done %s324, 128
        $region52: #{tpu_custom_call.1} parent=47 // pred_fallthru
          _
        %s332 = sand.u32 %s28, 1
        %s333 = scalar_lea.sflag [#allocation6], %s332
        %s334 = sand.u32 %s62, 1
        %s335 = smul.addr %s334, 8
        %s336 = scalar_lea.vmem [#allocation5], %s335
        // Predicated region
        $region53: #{tpu_custom_call.1} parent=47 // pred_check
          %p337 = pneg %p75
        $region54: #{tpu_custom_call.1} parent=47 // pred_check_branch
          %339 = sbr.rel (%p337) target = $region56
        $region55: #{tpu_custom_call.1} parent=47 // pred_region
          %340 = dma.done %s333, 128
        $region56: #{tpu_custom_call.1} parent=47 // pred_fallthru
          _
        %s341 = sand.u32 %s28, 1
        %s342 = scalar_lea.sflag [#allocation6], %s341
        %s343 = sand.u32 %s88, 1
        %s344 = smul.addr %s343, 8
        %s345 = scalar_lea.vmem [#allocation7], %s344
        // Predicated region
        $region57: #{tpu_custom_call.1} parent=47 // pred_check
          %p346 = pneg %p101
        $region58: #{tpu_custom_call.1} parent=47 // pred_check_branch
          %348 = sbr.rel (%p346) target = $region60
        $region59: #{tpu_custom_call.1} parent=47 // pred_region
          %349 = dma.done %s342, 128
        $region60: #{tpu_custom_call.1} parent=47 // pred_fallthru
          _
        // Predicated region
        $region61: #{tpu_custom_call.1} parent=47 // pred_check
          %p350 = pneg %p122
        $region62: #{tpu_custom_call.1} parent=47 // pred_check_branch
          %352 = sbr.rel (%p350) target = $region64
        $region63: #{tpu_custom_call.1} parent=47 // pred_region
          %353 = dma.done [#allocation9], 10240
        $region64: #{tpu_custom_call.1} parent=47 // pred_fallthru
          _
        // Predicated region
        $region65: #{tpu_custom_call.1} parent=47 // pred_check
          %p354 = pneg %p164
        $region66: #{tpu_custom_call.1} parent=47 // pred_check_branch
          %356 = sbr.rel (%p354) target = $region68
        $region67: #{tpu_custom_call.1} parent=47 // pred_region
          %357 = dma.done [#allocation9], 12288
        $region68: #{tpu_custom_call.1} parent=47 // pred_fallthru
          _
        %s358 = sand.u32 %s36, 1
        %s359 = scalar_lea.sflag [#allocation3], %s358
        %s360 = sand.u32 %s36, 1
        %s361 = smul.addr %s360, 8
        %s362 = scalar_lea.vmem [#allocation2], %s361
        %p363 = pneg %p49
        %p364 = pneg %p46
        %s365 = sand.u32 %s28, 1
        %s366 = scalar_lea.sflag [#allocation6], %s365
        %s367 = sand.u32 %s62, 1
        %s368 = smul.addr %s367, 8
        %s369 = scalar_lea.vmem [#allocation5], %s368
        %p370 = pneg %p75
        %p371 = pneg %p72
        %s372 = sand.u32 %s28, 1
        %s373 = scalar_lea.sflag [#allocation6], %s372
        %s374 = sand.u32 %s88, 1
        %s375 = smul.addr %s374, 8
        %s376 = scalar_lea.vmem [#allocation7], %s375
        %p377 = pneg %p101
        %p378 = pneg %p98
        %p379 = pneg %p122
        %p380 = pneg %p119
        %p381 = pneg %p143
        %p382 = pneg %p140
        %p383 = pneg %p164
        %p384 = pneg %p161
        %p385 = pneg %p185
        %p386 = pneg %p182
        %p387 = pneg %p211
        %p388 = pneg %p208
        %s389 = sand.u32 %s198, 1
        %s390 = scalar_lea.sflag [#allocation4], %s389
        %s391 = sand.u32 %s198, 1
        %s392 = smul.addr %s391, 8
        %s393 = scalar_lea.vmem [#allocation11], %s392
        %v394 = vld [vmem:[%s327] sm:$0xff]
        %v395 = vld [vmem:[%s336] sm:$0xff]
        %v396 = vld [vmem:[#allocation8] sm:$0xff]
        %v397 = vld [vmem:[#allocation8 + $0x8] sm:$0xff]
        %v398 = vld [vmem:[#allocation8 + $0x10] sm:$0xff]
        %v399 = vld [vmem:[#allocation8 + $0x18] sm:$0xff]
        %v400 = vld [vmem:[#allocation8 + $0x20] sm:$0xff]
        %v401 = vld [vmem:[#allocation8 + $0x28] sm:$0xff]
        %v402 = vld [vmem:[#allocation8 + $0x30] sm:$0xff]
        %v403 = vld [vmem:[#allocation8 + $0x38] sm:$0xff]
        %v404 = vld [vmem:[#allocation8 + $0x40] sm:$0xff]
        %v405 = vld [vmem:[#allocation8 + $0x48] sm:$0xff]
        %v406 = vld [vmem:[#allocation8 + $0x50] sm:$0xff]
        %v407 = vld [vmem:[#allocation8 + $0x58] sm:$0xff]
        %v408 = vld [vmem:[#allocation8 + $0x60] sm:$0xff]
        %v409 = vld [vmem:[#allocation8 + $0x68] sm:$0xff]
        %v410 = vld [vmem:[#allocation8 + $0x70] sm:$0xff]
        %v411 = vld [vmem:[#allocation8 + $0x78] sm:$0xff]
        %v412 = vld [vmem:[#allocation8 + $0x80] sm:$0xff]
        %v413 = vld [vmem:[#allocation8 + $0x88] sm:$0xff]
        %v414 = vld [vmem:[#allocation8 + $0x90] sm:$0xff]
        %v415 = vld [vmem:[#allocation8 + $0x98] sm:$0xff]
        %v416 = vld [vmem:[#allocation8 + $0xa0] sm:$0xff]
        %v417 = vld [vmem:[#allocation8 + $0xa8] sm:$0xff]
        %v418 = vld [vmem:[#allocation8 + $0xb0] sm:$0xff]
        %v419 = vld [vmem:[#allocation8 + $0xb8] sm:$0xff]
        %v420 = vld [vmem:[#allocation8 + $0xc0] sm:$0xff]
        %v421 = vld [vmem:[#allocation8 + $0xc8] sm:$0xff]
        %v422 = vld [vmem:[#allocation8 + $0xd0] sm:$0xff]
        %v423 = vld [vmem:[#allocation8 + $0xd8] sm:$0xff]
        %v424 = vld [vmem:[#allocation8 + $0xe0] sm:$0xff]
        %v425 = vld [vmem:[#allocation8 + $0xe8] sm:$0xff]
        %v426 = vld [vmem:[#allocation8 + $0xf0] sm:$0xff]
        %v427 = vld [vmem:[#allocation8 + $0xf8] sm:$0xff]
        %v428 = vld [vmem:[#allocation8 + $0x100] sm:$0xff]
        %v429 = vld [vmem:[#allocation8 + $0x108] sm:$0xff]
        %v430 = vld [vmem:[#allocation8 + $0x110] sm:$0xff]
        %v431 = vld [vmem:[#allocation8 + $0x118] sm:$0xff]
        %v432 = vld [vmem:[#allocation8 + $0x120] sm:$0xff]
        %v433 = vld [vmem:[#allocation8 + $0x128] sm:$0xff]
        %v434 = vld [vmem:[#allocation8 + $0x130] sm:$0xff]
        %v435 = vld [vmem:[#allocation8 + $0x138] sm:$0xff]
        %v436 = vld [vmem:[#allocation8 + $0x140] sm:$0xff]
        %v437 = vld [vmem:[#allocation8 + $0x148] sm:$0xff]
        %v438 = vld [vmem:[#allocation8 + $0x150] sm:$0xff]
        %v439 = vld [vmem:[#allocation8 + $0x158] sm:$0xff]
        %v440 = vld [vmem:[#allocation8 + $0x160] sm:$0xff]
        %v441 = vld [vmem:[#allocation8 + $0x168] sm:$0xff]
        %v442 = vld [vmem:[#allocation8 + $0x170] sm:$0xff]
        %v443 = vld [vmem:[#allocation8 + $0x178] sm:$0xff]
        %v444 = vld [vmem:[#allocation8 + $0x180] sm:$0xff]
        %v445 = vld [vmem:[#allocation8 + $0x188] sm:$0xff]
        %v446 = vld [vmem:[#allocation8 + $0x190] sm:$0xff]
        %v447 = vld [vmem:[#allocation8 + $0x198] sm:$0xff]
        %v448 = vld [vmem:[#allocation8 + $0x1a0] sm:$0xff]
        %v449 = vld [vmem:[#allocation8 + $0x1a8] sm:$0xff]
        %v450 = vld [vmem:[#allocation8 + $0x1b0] sm:$0xff]
        %v451 = vld [vmem:[#allocation8 + $0x1b8] sm:$0xff]
        %v452 = vld [vmem:[#allocation8 + $0x1c0] sm:$0xff]
        %v453 = vld [vmem:[#allocation8 + $0x1c8] sm:$0xff]
        %v454 = vld [vmem:[#allocation8 + $0x1d0] sm:$0xff]
        %v455 = vld [vmem:[#allocation8 + $0x1d8] sm:$0xff]
        %v456 = vld [vmem:[#allocation8 + $0x1e0] sm:$0xff]
        %v457 = vld [vmem:[#allocation8 + $0x1e8] sm:$0xff]
        %v458 = vld [vmem:[#allocation8 + $0x1f0] sm:$0xff]
        %v459 = vld [vmem:[#allocation8 + $0x1f8] sm:$0xff]
        %v460 = vld [vmem:[#allocation8 + $0x200] sm:$0xff]
        %v461 = vld [vmem:[#allocation8 + $0x208] sm:$0xff]
        %v462 = vld [vmem:[#allocation8 + $0x210] sm:$0xff]
        %v463 = vld [vmem:[#allocation8 + $0x218] sm:$0xff]
        %v464 = vld [vmem:[#allocation8 + $0x220] sm:$0xff]
        %v465 = vld [vmem:[#allocation8 + $0x228] sm:$0xff]
        %v466 = vld [vmem:[#allocation8 + $0x230] sm:$0xff]
        %v467 = vld [vmem:[#allocation8 + $0x238] sm:$0xff]
        %v468 = vld [vmem:[#allocation8 + $0x240] sm:$0xff]
        %v469 = vld [vmem:[#allocation8 + $0x248] sm:$0xff]
        %v470 = vld [vmem:[#allocation8 + $0x250] sm:$0xff]
        %v471 = vld [vmem:[#allocation8 + $0x258] sm:$0xff]
        %v472 = vld [vmem:[#allocation8 + $0x260] sm:$0xff]
        %v473 = vld [vmem:[#allocation8 + $0x268] sm:$0xff]
        %v474 = vld [vmem:[#allocation8 + $0x270] sm:$0xff]
        %v475 = vld [vmem:[#allocation8 + $0x278] sm:$0xff]
        %v476 = vld [vmem:[%s4] sm:$0x1f]
        %v477 = vld [vmem:[#allocation10] sm:$0xff]
        %v478 = vld [vmem:[#allocation10 + $0x8] sm:$0xff]
        %v479 = vld [vmem:[#allocation10 + $0x10] sm:$0xff]
        %v480 = vld [vmem:[#allocation10 + $0x18] sm:$0xff]
        %v481 = vld [vmem:[#allocation10 + $0x20] sm:$0xff]
        %v482 = vld [vmem:[#allocation10 + $0x28] sm:$0xff]
        %v483 = vld [vmem:[#allocation10 + $0x30] sm:$0xff]
        %v484 = vld [vmem:[#allocation10 + $0x38] sm:$0xff]
        %v485 = vld [vmem:[#allocation10 + $0x40] sm:$0xff]
        %v486 = vld [vmem:[#allocation10 + $0x48] sm:$0xff]
        %v487 = vld [vmem:[#allocation10 + $0x50] sm:$0xff]
        %v488 = vld [vmem:[#allocation10 + $0x58] sm:$0xff]
        %v489 = vld [vmem:[#allocation10 + $0x60] sm:$0xff]
        %v490 = vld [vmem:[#allocation10 + $0x68] sm:$0xff]
        %v491 = vld [vmem:[#allocation10 + $0x70] sm:$0xff]
        %v492 = vld [vmem:[#allocation10 + $0x78] sm:$0xff]
        %v493 = vld [vmem:[#allocation10 + $0x80] sm:$0xff]
        %v494 = vld [vmem:[#allocation10 + $0x88] sm:$0xff]
        %v495 = vld [vmem:[#allocation10 + $0x90] sm:$0xff]
        %v496 = vld [vmem:[#allocation10 + $0x98] sm:$0xff]
        %v497 = vld [vmem:[#allocation10 + $0xa0] sm:$0xff]
        %v498 = vld [vmem:[#allocation10 + $0xa8] sm:$0xff]
        %v499 = vld [vmem:[#allocation10 + $0xb0] sm:$0xff]
        %v500 = vld [vmem:[#allocation10 + $0xb8] sm:$0xff]
        %v501 = vld [vmem:[#allocation10 + $0xc0] sm:$0xff]
        %v502 = vld [vmem:[#allocation10 + $0xc8] sm:$0xff]
        %v503 = vld [vmem:[#allocation10 + $0xd0] sm:$0xff]
        %v504 = vld [vmem:[#allocation10 + $0xd8] sm:$0xff]
        %v505 = vld [vmem:[#allocation10 + $0xe0] sm:$0xff]
        %v506 = vld [vmem:[#allocation10 + $0xe8] sm:$0xff]
        %v507 = vld [vmem:[#allocation10 + $0xf0] sm:$0xff]
        %v508 = vld [vmem:[#allocation10 + $0xf8] sm:$0xff]
        %v509 = vld [vmem:[#allocation10 + $0x100] sm:$0xff]
        %v510 = vld [vmem:[#allocation10 + $0x108] sm:$0xff]
        %v511 = vld [vmem:[#allocation10 + $0x110] sm:$0xff]
        %v512 = vld [vmem:[#allocation10 + $0x118] sm:$0xff]
        %v513 = vld [vmem:[#allocation10 + $0x120] sm:$0xff]
        %v514 = vld [vmem:[#allocation10 + $0x128] sm:$0xff]
        %v515 = vld [vmem:[#allocation10 + $0x130] sm:$0xff]
        %v516 = vld [vmem:[#allocation10 + $0x138] sm:$0xff]
        %v517 = vld [vmem:[#allocation10 + $0x140] sm:$0xff]
        %v518 = vld [vmem:[#allocation10 + $0x148] sm:$0xff]
        %v519 = vld [vmem:[#allocation10 + $0x150] sm:$0xff]
        %v520 = vld [vmem:[#allocation10 + $0x158] sm:$0xff]
        %v521 = vld [vmem:[#allocation10 + $0x160] sm:$0xff]
        %v522 = vld [vmem:[#allocation10 + $0x168] sm:$0xff]
        %v523 = vld [vmem:[#allocation10 + $0x170] sm:$0xff]
        %v524 = vld [vmem:[#allocation10 + $0x178] sm:$0xff]
        %v525 = vld [vmem:[#allocation10 + $0x180] sm:$0xff]
        %v526 = vld [vmem:[#allocation10 + $0x188] sm:$0xff]
        %v527 = vld [vmem:[#allocation10 + $0x190] sm:$0xff]
        %v528 = vld [vmem:[#allocation10 + $0x198] sm:$0xff]
        %v529 = vld [vmem:[#allocation10 + $0x1a0] sm:$0xff]
        %v530 = vld [vmem:[#allocation10 + $0x1a8] sm:$0xff]
        %v531 = vld [vmem:[#allocation10 + $0x1b0] sm:$0xff]
        %v532 = vld [vmem:[#allocation10 + $0x1b8] sm:$0xff]
        %v533 = vld [vmem:[#allocation10 + $0x1c0] sm:$0xff]
        %v534 = vld [vmem:[#allocation10 + $0x1c8] sm:$0xff]
        %v535 = vld [vmem:[#allocation10 + $0x1d0] sm:$0xff]
        %v536 = vld [vmem:[#allocation10 + $0x1d8] sm:$0xff]
        %v537 = vld [vmem:[#allocation10 + $0x1e0] sm:$0xff]
        %v538 = vld [vmem:[#allocation10 + $0x1e8] sm:$0xff]
        %v539 = vld [vmem:[#allocation10 + $0x1f0] sm:$0xff]
        %v540 = vld [vmem:[#allocation10 + $0x1f8] sm:$0xff]
        %v541 = vld [vmem:[#allocation10 + $0x200] sm:$0xff]
        %v542 = vld [vmem:[#allocation10 + $0x208] sm:$0xff]
        %v543 = vld [vmem:[#allocation10 + $0x210] sm:$0xff]
        %v544 = vld [vmem:[#allocation10 + $0x218] sm:$0xff]
        %v545 = vld [vmem:[#allocation10 + $0x220] sm:$0xff]
        %v546 = vld [vmem:[#allocation10 + $0x228] sm:$0xff]
        %v547 = vld [vmem:[#allocation10 + $0x230] sm:$0xff]
        %v548 = vld [vmem:[#allocation10 + $0x238] sm:$0xff]
        %v549 = vld [vmem:[#allocation10 + $0x240] sm:$0xff]
        %v550 = vld [vmem:[#allocation10 + $0x248] sm:$0xff]
        %v551 = vld [vmem:[#allocation10 + $0x250] sm:$0xff]
        %v552 = vld [vmem:[#allocation10 + $0x258] sm:$0xff]
        %v553 = vld [vmem:[#allocation10 + $0x260] sm:$0xff]
        %v554 = vld [vmem:[#allocation10 + $0x268] sm:$0xff]
        %v555 = vld [vmem:[#allocation10 + $0x270] sm:$0xff]
        %v556 = vld [vmem:[#allocation10 + $0x278] sm:$0xff]
        %v557 = vld [vmem:[#allocation10 + $0x280] sm:$0xff]
        %v558 = vld [vmem:[#allocation10 + $0x288] sm:$0xff]
        %v559 = vld [vmem:[#allocation10 + $0x290] sm:$0xff]
        %v560 = vld [vmem:[#allocation10 + $0x298] sm:$0xff]
        %v561 = vld [vmem:[#allocation10 + $0x2a0] sm:$0xff]
        %v562 = vld [vmem:[#allocation10 + $0x2a8] sm:$0xff]
        %v563 = vld [vmem:[#allocation10 + $0x2b0] sm:$0xff]
        %v564 = vld [vmem:[#allocation10 + $0x2b8] sm:$0xff]
        %v565 = vld [vmem:[#allocation10 + $0x2c0] sm:$0xff]
        %v566 = vld [vmem:[#allocation10 + $0x2c8] sm:$0xff]
        %v567 = vld [vmem:[#allocation10 + $0x2d0] sm:$0xff]
        %v568 = vld [vmem:[#allocation10 + $0x2d8] sm:$0xff]
        %v569 = vld [vmem:[#allocation10 + $0x2e0] sm:$0xff]
        %v570 = vld [vmem:[#allocation10 + $0x2e8] sm:$0xff]
        %v571 = vld [vmem:[#allocation10 + $0x2f0] sm:$0xff]
        %v572 = vld [vmem:[#allocation10 + $0x2f8] sm:$0xff]
        %v573 = vld [vmem:[%s6] sm:$0x7]
        %v574 = vld [vmem:[%s345] sm:$0xff]
        %v576 = vlaneseq
        %v577 = vshrl.u32 %v576, 7
        %v578 = vsub.s32 0, %v577
        %v579 = vrot.slane %v476, %v578
        %v580 = vlaneseq
        %v581 = vshrl.u32 %v580, 7
        %v582 = vsub.s32 1, %v581
        %v583 = vrot.slane %v476, %v582
        %v584 = vlaneseq
        %v585 = vshrl.u32 %v584, 7
        %v586 = vsub.s32 2, %v585
        %v587 = vrot.slane %v476, %v586
        %v588 = vlaneseq
        %v589 = vshrl.u32 %v588, 7
        %v590 = vsub.s32 3, %v589
        %v591 = vrot.slane %v476, %v590
        %v592 = vlaneseq
        %v593 = vshrl.u32 %v592, 7
        %v594 = vsub.s32 4, %v593
        %v595 = vrot.slane %v476, %v594
        %601 = vmatprep.subr.mxu0 %v397
        %602 = vmatpush1.msra.mxu0 %v396
        %603 = vmatprep.subr.mxu0 %v402
        %604 = vmatpush1.msra.mxu0 %v401
        %605 = vmatprep.subr.mxu0 %v407
        %606 = vmatpush1.msra.mxu0 %v406
        %607 = vmatprep.subr.mxu0 %v412
        %608 = vmatpush1.msra.mxu0 %v411
        %609 = vmatprep.subr.mxu0 %v417
        %610 = vmatpush1.msra.mxu0 %v416
        %611 = vmatprep.subr.mxu0 %v422
        %612 = vmatpush1.msra.mxu0 %v421
        %613 = vmatprep.subr.mxu0 %v427
        %614 = vmatpush1.msra.mxu0 %v426
        %615 = vmatprep.subr.mxu0 %v432
        %616 = vmatpush1.msra.mxu0 %v431
        %617 = vmatprep.subr.mxu0 %v437
        %618 = vmatpush1.msra.mxu0 %v436
        %619 = vmatprep.subr.mxu0 %v442
        %620 = vmatpush1.msra.mxu0 %v441
        %621 = vmatprep.subr.mxu0 %v447
        %622 = vmatpush1.msra.mxu0 %v446
        %623 = vmatprep.subr.mxu0 %v452
        %624 = vmatpush1.msra.mxu0 %v451
        %625 = vmatprep.subr.mxu0 %v457
        %626 = vmatpush1.msra.mxu0 %v456
        %627 = vmatprep.subr.mxu0 %v462
        %628 = vmatpush1.msra.mxu0 %v461
        %629 = vmatprep.subr.mxu0 %v467
        %630 = vmatpush1.msra.mxu0 %v466
        %631 = vmatprep.subr.mxu0 %v472
        %632 = vmatpush1.msra.mxu0 %v471
        %633 = vmatprep.subr.mxu0 0.0
        %634 = vmatpush1.msra.mxu0 0.0
        %635 = vmatprep.subr.mxu0 0.0
        %636 = vmatpush1.msra.mxu0 0.0
        %637 = vmatprep.subr.mxu0 0.0
        %638 = vmatpush1.msra.mxu0 0.0
        %639 = vmatprep.subr.mxu0 0.0
        %640 = vmatpush1.msra.mxu0 0.0
        %641 = vmatprep.subr.mxu0 0.0
        %642 = vmatpush1.msra.mxu0 0.0
        %643 = vmatprep.subr.mxu0 0.0
        %644 = vmatpush1.msra.mxu0 0.0
        %645 = vmatprep.subr.mxu0 0.0
        %646 = vmatpush1.msra.mxu0 0.0
        %647 = vmatprep.subr.mxu0 0.0
        %648 = vmatpush1.msra.mxu0 0.0
        %649 = vmatprep.subr.mxu0 0.0
        %650 = vmatpush1.msra.mxu0 0.0
        %651 = vmatprep.subr.mxu0 0.0
        %652 = vmatpush1.msra.mxu0 0.0
        %653 = vmatprep.subr.mxu0 0.0
        %654 = vmatpush1.msra.mxu0 0.0
        %655 = vmatprep.subr.mxu0 0.0
        %656 = vmatpush1.msra.mxu0 0.0
        %657 = vmatprep.subr.mxu0 0.0
        %658 = vmatpush1.msra.mxu0 0.0
        %659 = vmatprep.subr.mxu0 0.0
        %660 = vmatpush1.msra.mxu0 0.0
        %661 = vmatprep.subr.mxu0 0.0
        %662 = vmatpush1.msra.mxu0 0.0
        %663 = vmatprep.subr.mxu0 0.0
        %664 = vmatpush1.msra.mxu0 0.0
        %665 = vmatprep.mubr.f32.mxu0 0.0
        %666 = vmatmul.mubr.f32.gmra.mrb[0].mxu0 %v574
        %v667 = vpop.f32.mrb[0].mxu0
        %v668 = vadd.f32 %v579, %v667
        %v669 = vpop.f32.mrb[0].mxu0
        %v670 = vadd.f32 %v583, %v669
        %671 = vdwg.mxu0
        %672 = vmatprep.subr.mxu0 %v399
        %673 = vmatpush1.msra.mxu0 %v398
        %674 = vmatprep.subr.mxu0 %v404
        %675 = vmatpush1.msra.mxu0 %v403
        %676 = vmatprep.subr.mxu0 %v409
        %677 = vmatpush1.msra.mxu0 %v408
        %678 = vmatprep.subr.mxu0 %v414
        %679 = vmatpush1.msra.mxu0 %v413
        %680 = vmatprep.subr.mxu0 %v419
        %681 = vmatpush1.msra.mxu0 %v418
        %682 = vmatprep.subr.mxu0 %v424
        %683 = vmatpush1.msra.mxu0 %v423
        %684 = vmatprep.subr.mxu0 %v429
        %685 = vmatpush1.msra.mxu0 %v428
        %686 = vmatprep.subr.mxu0 %v434
        %687 = vmatpush1.msra.mxu0 %v433
        %688 = vmatprep.subr.mxu0 %v439
        %689 = vmatpush1.msra.mxu0 %v438
        %690 = vmatprep.subr.mxu0 %v444
        %691 = vmatpush1.msra.mxu0 %v443
        %692 = vmatprep.subr.mxu0 %v449
        %693 = vmatpush1.msra.mxu0 %v448
        %694 = vmatprep.subr.mxu0 %v454
        %695 = vmatpush1.msra.mxu0 %v453
        %696 = vmatprep.subr.mxu0 %v459
        %697 = vmatpush1.msra.mxu0 %v458
        %698 = vmatprep.subr.mxu0 %v464
        %699 = vmatpush1.msra.mxu0 %v463
        %700 = vmatprep.subr.mxu0 %v469
        %701 = vmatpush1.msra.mxu0 %v468
        %702 = vmatprep.subr.mxu0 %v474
        %703 = vmatpush1.msra.mxu0 %v473
        %704 = vmatprep.subr.mxu0 0.0
        %705 = vmatpush1.msra.mxu0 0.0
        %706 = vmatprep.subr.mxu0 0.0
        %707 = vmatpush1.msra.mxu0 0.0
        %708 = vmatprep.subr.mxu0 0.0
        %709 = vmatpush1.msra.mxu0 0.0
        %710 = vmatprep.subr.mxu0 0.0
        %711 = vmatpush1.msra.mxu0 0.0
        %712 = vmatprep.subr.mxu0 0.0
        %713 = vmatpush1.msra.mxu0 0.0
        %714 = vmatprep.subr.mxu0 0.0
        %715 = vmatpush1.msra.mxu0 0.0
        %716 = vmatprep.subr.mxu0 0.0
        %717 = vmatpush1.msra.mxu0 0.0
        %718 = vmatprep.subr.mxu0 0.0
        %719 = vmatpush1.msra.mxu0 0.0
        %720 = vmatprep.subr.mxu0 0.0
        %721 = vmatpush1.msra.mxu0 0.0
        %722 = vmatprep.subr.mxu0 0.0
        %723 = vmatpush1.msra.mxu0 0.0
        %724 = vmatprep.subr.mxu0 0.0
        %725 = vmatpush1.msra.mxu0 0.0
        %726 = vmatprep.subr.mxu0 0.0
        %727 = vmatpush1.msra.mxu0 0.0
        %728 = vmatprep.subr.mxu0 0.0
        %729 = vmatpush1.msra.mxu0 0.0
        %730 = vmatprep.subr.mxu0 0.0
        %731 = vmatpush1.msra.mxu0 0.0
        %732 = vmatprep.subr.mxu0 0.0
        %733 = vmatpush1.msra.mxu0 0.0
        %734 = vmatprep.subr.mxu0 0.0
        %735 = vmatpush1.msra.mxu0 0.0
        %736 = vmatprep.mubr.f32.mxu0 0.0
        %737 = vmatmul.mubr.f32.gmra.mrb[0].mxu0 %v574
        %v738 = vpop.f32.mrb[0].mxu0
        %v739 = vadd.f32 %v587, %v738
        %v740 = vpop.f32.mrb[0].mxu0
        %v741 = vadd.f32 %v591, %v740
        %742 = vdwg.mxu0
        %743 = vmatprep.subr.mxu0 0.0
        %744 = vmatpush1.msra.mxu0 %v400
        %745 = vmatprep.subr.mxu0 0.0
        %746 = vmatpush1.msra.mxu0 %v405
        %747 = vmatprep.subr.mxu0 0.0
        %748 = vmatpush1.msra.mxu0 %v410
        %749 = vmatprep.subr.mxu0 0.0
        %750 = vmatpush1.msra.mxu0 %v415
        %751 = vmatprep.subr.mxu0 0.0
        %752 = vmatpush1.msra.mxu0 %v420
        %753 = vmatprep.subr.mxu0 0.0
        %754 = vmatpush1.msra.mxu0 %v425
        %755 = vmatprep.subr.mxu0 0.0
        %756 = vmatpush1.msra.mxu0 %v430
        %757 = vmatprep.subr.mxu0 0.0
        %758 = vmatpush1.msra.mxu0 %v435
        %759 = vmatprep.subr.mxu0 0.0
        %760 = vmatpush1.msra.mxu0 %v440
        %761 = vmatprep.subr.mxu0 0.0
        %762 = vmatpush1.msra.mxu0 %v445
        %763 = vmatprep.subr.mxu0 0.0
        %764 = vmatpush1.msra.mxu0 %v450
        %765 = vmatprep.subr.mxu0 0.0
        %766 = vmatpush1.msra.mxu0 %v455
        %767 = vmatprep.subr.mxu0 0.0
        %768 = vmatpush1.msra.mxu0 %v460
        %769 = vmatprep.subr.mxu0 0.0
        %770 = vmatpush1.msra.mxu0 %v465
        %771 = vmatprep.subr.mxu0 0.0
        %772 = vmatpush1.msra.mxu0 %v470
        %773 = vmatprep.subr.mxu0 0.0
        %774 = vmatpush1.msra.mxu0 %v475
        %775 = vmatprep.subr.mxu0 0.0
        %776 = vmatpush1.msra.mxu0 0.0
        %777 = vmatprep.subr.mxu0 0.0
        %778 = vmatpush1.msra.mxu0 0.0
        %779 = vmatprep.subr.mxu0 0.0
        %780 = vmatpush1.msra.mxu0 0.0
        %781 = vmatprep.subr.mxu0 0.0
        %782 = vmatpush1.msra.mxu0 0.0
        %783 = vmatprep.subr.mxu0 0.0
        %784 = vmatpush1.msra.mxu0 0.0
        %785 = vmatprep.subr.mxu0 0.0
        %786 = vmatpush1.msra.mxu0 0.0
        %787 = vmatprep.subr.mxu0 0.0
        %788 = vmatpush1.msra.mxu0 0.0
        %789 = vmatprep.subr.mxu0 0.0
        %790 = vmatpush1.msra.mxu0 0.0
        %791 = vmatprep.subr.mxu0 0.0
        %792 = vmatpush1.msra.mxu0 0.0
        %793 = vmatprep.subr.mxu0 0.0
        %794 = vmatpush1.msra.mxu0 0.0
        %795 = vmatprep.subr.mxu0 0.0
        %796 = vmatpush1.msra.mxu0 0.0
        %797 = vmatprep.subr.mxu0 0.0
        %798 = vmatpush1.msra.mxu0 0.0
        %799 = vmatprep.subr.mxu0 0.0
        %800 = vmatpush1.msra.mxu0 0.0
        %801 = vmatprep.subr.mxu0 0.0
        %802 = vmatpush1.msra.mxu0 0.0
        %803 = vmatprep.subr.mxu0 0.0
        %804 = vmatpush1.msra.mxu0 0.0
        %805 = vmatprep.subr.mxu0 0.0
        %806 = vmatpush1.msra.mxu0 0.0
        %807 = vmatprep.mubr.f32.mxu0 0.0
        %808 = vmatmul.mubr.f32.gmra.mrb[0].mxu0 %v574
        %v809 = vpop.f32.mrb[0].mxu0
        %v810 = vadd.f32 %v595, %v809
        %v811 = vpop.f32.mrb[0].mxu0
        %812 = vdwg.mxu0
        %814 = vset.pattern.permute.xlu0 0
        %815 = vperm.xlu0 %814, %v394
        %v816 = vpop.permute.xlu0 %815
        %v818 = vlaneseq
        %v819 = vshrl.u32 %v818, 7
        %v820 = vsub.s32 0, %v819
        %v821 = vrot.slane %v668, %v820
        %v822 = vmul.f32 %v816, %v821
        %v823 = vadd.f32 %v822, 0.0
        %824 = vset.pattern.permute.xlu0 1
        %825 = vperm.xlu0 %824, %v394
        %v826 = vpop.permute.xlu0 %825
        %v828 = vlaneseq
        %v829 = vshrl.u32 %v828, 7
        %v830 = vsub.s32 1, %v829
        %v831 = vrot.slane %v668, %v830
        %v832 = vmul.f32 %v826, %v831
        %v833 = vadd.f32 %v823, %v832
        %834 = vset.pattern.permute.xlu0 2
        %835 = vperm.xlu0 %834, %v394
        %v836 = vpop.permute.xlu0 %835
        %v838 = vlaneseq
        %v839 = vshrl.u32 %v838, 7
        %v840 = vsub.s32 2, %v839
        %v841 = vrot.slane %v668, %v840
        %v842 = vmul.f32 %v836, %v841
        %v843 = vadd.f32 %v833, %v842
        %844 = vset.pattern.permute.xlu0 3
        %845 = vperm.xlu0 %844, %v394
        %v846 = vpop.permute.xlu0 %845
        %v848 = vlaneseq
        %v849 = vshrl.u32 %v848, 7
        %v850 = vsub.s32 3, %v849
        %v851 = vrot.slane %v668, %v850
        %v852 = vmul.f32 %v846, %v851
        %v853 = vadd.f32 %v843, %v852
        %854 = vset.pattern.permute.xlu0 4
        %855 = vperm.xlu0 %854, %v394
        %v856 = vpop.permute.xlu0 %855
        %v858 = vlaneseq
        %v859 = vshrl.u32 %v858, 7
        %v860 = vsub.s32 4, %v859
        %v861 = vrot.slane %v668, %v860
        %v862 = vmul.f32 %v856, %v861
        %v863 = vadd.f32 %v853, %v862
        %864 = vset.pattern.permute.xlu0 5
        %865 = vperm.xlu0 %864, %v394
        %v866 = vpop.permute.xlu0 %865
        %v868 = vlaneseq
        %v869 = vshrl.u32 %v868, 7
        %v870 = vsub.s32 5, %v869
        %v871 = vrot.slane %v668, %v870
        %v872 = vmul.f32 %v866, %v871
        %v873 = vadd.f32 %v863, %v872
        %874 = vset.pattern.permute.xlu0 6
        %875 = vperm.xlu0 %874, %v394
        %v876 = vpop.permute.xlu0 %875
        %v878 = vlaneseq
        %v879 = vshrl.u32 %v878, 7
        %v880 = vsub.s32 6, %v879
        %v881 = vrot.slane %v668, %v880
        %v882 = vmul.f32 %v876, %v881
        %v883 = vadd.f32 %v873, %v882
        %884 = vset.pattern.permute.xlu0 7
        %885 = vperm.xlu0 %884, %v394
        %v886 = vpop.permute.xlu0 %885
        %v888 = vlaneseq
        %v889 = vshrl.u32 %v888, 7
        %v890 = vsub.s32 7, %v889
        %v891 = vrot.slane %v668, %v890
        %v892 = vmul.f32 %v886, %v891
        %v893 = vadd.f32 %v883, %v892
        %895 = vset.pattern.permute.xlu0 0
        %896 = vperm.xlu0 %895, %v395
        %v897 = vpop.permute.xlu0 %896
        %v899 = vlaneseq
        %v900 = vshrl.u32 %v899, 7
        %v901 = vsub.s32 0, %v900
        %v902 = vrot.slane %v670, %v901
        %v903 = vmul.f32 %v897, %v902
        %v904 = vadd.f32 %v903, 0.0
        %905 = vset.pattern.permute.xlu0 1
        %906 = vperm.xlu0 %905, %v395
        %v907 = vpop.permute.xlu0 %906
        %v909 = vlaneseq
        %v910 = vshrl.u32 %v909, 7
        %v911 = vsub.s32 1, %v910
        %v912 = vrot.slane %v670, %v911
        %v913 = vmul.f32 %v907, %v912
        %v914 = vadd.f32 %v904, %v913
        %915 = vset.pattern.permute.xlu0 2
        %916 = vperm.xlu0 %915, %v395
        %v917 = vpop.permute.xlu0 %916
        %v919 = vlaneseq
        %v920 = vshrl.u32 %v919, 7
        %v921 = vsub.s32 2, %v920
        %v922 = vrot.slane %v670, %v921
        %v923 = vmul.f32 %v917, %v922
        %v924 = vadd.f32 %v914, %v923
        %925 = vset.pattern.permute.xlu0 3
        %926 = vperm.xlu0 %925, %v395
        %v927 = vpop.permute.xlu0 %926
        %v929 = vlaneseq
        %v930 = vshrl.u32 %v929, 7
        %v931 = vsub.s32 3, %v930
        %v932 = vrot.slane %v670, %v931
        %v933 = vmul.f32 %v927, %v932
        %v934 = vadd.f32 %v924, %v933
        %935 = vset.pattern.permute.xlu0 4
        %936 = vperm.xlu0 %935, %v395
        %v937 = vpop.permute.xlu0 %936
        %v939 = vlaneseq
        %v940 = vshrl.u32 %v939, 7
        %v941 = vsub.s32 4, %v940
        %v942 = vrot.slane %v670, %v941
        %v943 = vmul.f32 %v937, %v942
        %v944 = vadd.f32 %v934, %v943
        %945 = vset.pattern.permute.xlu0 5
        %946 = vperm.xlu0 %945, %v395
        %v947 = vpop.permute.xlu0 %946
        %v949 = vlaneseq
        %v950 = vshrl.u32 %v949, 7
        %v951 = vsub.s32 5, %v950
        %v952 = vrot.slane %v670, %v951
        %v953 = vmul.f32 %v947, %v952
        %v954 = vadd.f32 %v944, %v953
        %955 = vset.pattern.permute.xlu0 6
        %956 = vperm.xlu0 %955, %v395
        %v957 = vpop.permute.xlu0 %956
        %v959 = vlaneseq
        %v960 = vshrl.u32 %v959, 7
        %v961 = vsub.s32 6, %v960
        %v962 = vrot.slane %v670, %v961
        %v963 = vmul.f32 %v957, %v962
        %v964 = vadd.f32 %v954, %v963
        %965 = vset.pattern.permute.xlu0 7
        %966 = vperm.xlu0 %965, %v395
        %v967 = vpop.permute.xlu0 %966
        %v969 = vlaneseq
        %v970 = vshrl.u32 %v969, 7
        %v971 = vsub.s32 7, %v970
        %v972 = vrot.slane %v670, %v971
        %v973 = vmul.f32 %v967, %v972
        %v974 = vadd.f32 %v964, %v973
        %v976 = vlaneseq
        %v977 = vshrl.u32 %v976, 7
        %v978 = vsub.s32 0, %v977
        %v979 = vrot.slane %v573, %v978
        %v980 = vlaneseq
        %v981 = vshrl.u32 %v980, 7
        %v982 = vsub.s32 1, %v981
        %v983 = vrot.slane %v573, %v982
        %v984 = vlaneseq
        %v985 = vshrl.u32 %v984, 7
        %v986 = vsub.s32 2, %v985
        %v987 = vrot.slane %v573, %v986
        %991 = vmatprep.subr.mxu0 %v478
        %992 = vmatpush1.msra.mxu0 %v477
        %993 = vmatprep.subr.mxu0 %v481
        %994 = vmatpush1.msra.mxu0 %v480
        %995 = vmatprep.subr.mxu0 %v484
        %996 = vmatpush1.msra.mxu0 %v483
        %997 = vmatprep.subr.mxu0 %v487
        %998 = vmatpush1.msra.mxu0 %v486
        %999 = vmatprep.subr.mxu0 %v490
        %1000 = vmatpush1.msra.mxu0 %v489
        %1001 = vmatprep.subr.mxu0 %v493
        %1002 = vmatpush1.msra.mxu0 %v492
        %1003 = vmatprep.subr.mxu0 %v496
        %1004 = vmatpush1.msra.mxu0 %v495
        %1005 = vmatprep.subr.mxu0 %v499
        %1006 = vmatpush1.msra.mxu0 %v498
        %1007 = vmatprep.subr.mxu0 %v502
        %1008 = vmatpush1.msra.mxu0 %v501
        %1009 = vmatprep.subr.mxu0 %v505
        %1010 = vmatpush1.msra.mxu0 %v504
        %1011 = vmatprep.subr.mxu0 %v508
        %1012 = vmatpush1.msra.mxu0 %v507
        %1013 = vmatprep.subr.mxu0 %v511
        %1014 = vmatpush1.msra.mxu0 %v510
        %1015 = vmatprep.subr.mxu0 %v514
        %1016 = vmatpush1.msra.mxu0 %v513
        %1017 = vmatprep.subr.mxu0 %v517
        %1018 = vmatpush1.msra.mxu0 %v516
        %1019 = vmatprep.subr.mxu0 %v520
        %1020 = vmatpush1.msra.mxu0 %v519
        %1021 = vmatprep.subr.mxu0 %v523
        %1022 = vmatpush1.msra.mxu0 %v522
        %1023 = vmatprep.subr.mxu0 %v526
        %1024 = vmatpush1.msra.mxu0 %v525
        %1025 = vmatprep.subr.mxu0 %v529
        %1026 = vmatpush1.msra.mxu0 %v528
        %1027 = vmatprep.subr.mxu0 %v532
        %1028 = vmatpush1.msra.mxu0 %v531
        %1029 = vmatprep.subr.mxu0 %v535
        %1030 = vmatpush1.msra.mxu0 %v534
        %1031 = vmatprep.subr.mxu0 %v538
        %1032 = vmatpush1.msra.mxu0 %v537
        %1033 = vmatprep.subr.mxu0 %v541
        %1034 = vmatpush1.msra.mxu0 %v540
        %1035 = vmatprep.subr.mxu0 %v544
        %1036 = vmatpush1.msra.mxu0 %v543
        %1037 = vmatprep.subr.mxu0 %v547
        %1038 = vmatpush1.msra.mxu0 %v546
        %1039 = vmatprep.subr.mxu0 %v550
        %1040 = vmatpush1.msra.mxu0 %v549
        %1041 = vmatprep.subr.mxu0 %v553
        %1042 = vmatpush1.msra.mxu0 %v552
        %1043 = vmatprep.subr.mxu0 %v556
        %1044 = vmatpush1.msra.mxu0 %v555
        %1045 = vmatprep.subr.mxu0 %v559
        %1046 = vmatpush1.msra.mxu0 %v558
        %1047 = vmatprep.subr.mxu0 %v562
        %1048 = vmatpush1.msra.mxu0 %v561
        %1049 = vmatprep.subr.mxu0 %v565
        %1050 = vmatpush1.msra.mxu0 %v564
        %1051 = vmatprep.subr.mxu0 %v568
        %1052 = vmatpush1.msra.mxu0 %v567
        %1053 = vmatprep.subr.mxu0 %v571
        %1054 = vmatpush1.msra.mxu0 %v570
        %1055 = vmatprep.mubr.f32.mxu0 %v974
        %1056 = vmatmul.mubr.f32.gmra.mrb[0].mxu0 %v893
        %v1057 = vpop.f32.mrb[0].mxu0
        %v1058 = vadd.f32 %v979, %v1057
        %v1059 = vpop.f32.mrb[0].mxu0
        %v1060 = vadd.f32 %v983, %v1059
        %1061 = vdwg.mxu0
        %1062 = vmatprep.subr.mxu0 0.0
        %1063 = vmatpush1.msra.mxu0 %v479
        %1064 = vmatprep.subr.mxu0 0.0
        %1065 = vmatpush1.msra.mxu0 %v482
        %1066 = vmatprep.subr.mxu0 0.0
        %1067 = vmatpush1.msra.mxu0 %v485
        %1068 = vmatprep.subr.mxu0 0.0
        %1069 = vmatpush1.msra.mxu0 %v488
        %1070 = vmatprep.subr.mxu0 0.0
        %1071 = vmatpush1.msra.mxu0 %v491
        %1072 = vmatprep.subr.mxu0 0.0
        %1073 = vmatpush1.msra.mxu0 %v494
        %1074 = vmatprep.subr.mxu0 0.0
        %1075 = vmatpush1.msra.mxu0 %v497
        %1076 = vmatprep.subr.mxu0 0.0
        %1077 = vmatpush1.msra.mxu0 %v500
        %1078 = vmatprep.subr.mxu0 0.0
        %1079 = vmatpush1.msra.mxu0 %v503
        %1080 = vmatprep.subr.mxu0 0.0
        %1081 = vmatpush1.msra.mxu0 %v506
        %1082 = vmatprep.subr.mxu0 0.0
        %1083 = vmatpush1.msra.mxu0 %v509
        %1084 = vmatprep.subr.mxu0 0.0
        %1085 = vmatpush1.msra.mxu0 %v512
        %1086 = vmatprep.subr.mxu0 0.0
        %1087 = vmatpush1.msra.mxu0 %v515
        %1088 = vmatprep.subr.mxu0 0.0
        %1089 = vmatpush1.msra.mxu0 %v518
        %1090 = vmatprep.subr.mxu0 0.0
        %1091 = vmatpush1.msra.mxu0 %v521
        %1092 = vmatprep.subr.mxu0 0.0
        %1093 = vmatpush1.msra.mxu0 %v524
        %1094 = vmatprep.subr.mxu0 0.0
        %1095 = vmatpush1.msra.mxu0 %v527
        %1096 = vmatprep.subr.mxu0 0.0
        %1097 = vmatpush1.msra.mxu0 %v530
        %1098 = vmatprep.subr.mxu0 0.0
        %1099 = vmatpush1.msra.mxu0 %v533
        %1100 = vmatprep.subr.mxu0 0.0
        %1101 = vmatpush1.msra.mxu0 %v536
        %1102 = vmatprep.subr.mxu0 0.0
        %1103 = vmatpush1.msra.mxu0 %v539
        %1104 = vmatprep.subr.mxu0 0.0
        %1105 = vmatpush1.msra.mxu0 %v542
        %1106 = vmatprep.subr.mxu0 0.0
        %1107 = vmatpush1.msra.mxu0 %v545
        %1108 = vmatprep.subr.mxu0 0.0
        %1109 = vmatpush1.msra.mxu0 %v548
        %1110 = vmatprep.subr.mxu0 0.0
        %1111 = vmatpush1.msra.mxu0 %v551
        %1112 = vmatprep.subr.mxu0 0.0
        %1113 = vmatpush1.msra.mxu0 %v554
        %1114 = vmatprep.subr.mxu0 0.0
        %1115 = vmatpush1.msra.mxu0 %v557
        %1116 = vmatprep.subr.mxu0 0.0
        %1117 = vmatpush1.msra.mxu0 %v560
        %1118 = vmatprep.subr.mxu0 0.0
        %1119 = vmatpush1.msra.mxu0 %v563
        %1120 = vmatprep.subr.mxu0 0.0
        %1121 = vmatpush1.msra.mxu0 %v566
        %1122 = vmatprep.subr.mxu0 0.0
        %1123 = vmatpush1.msra.mxu0 %v569
        %1124 = vmatprep.subr.mxu0 0.0
        %1125 = vmatpush1.msra.mxu0 %v572
        %1126 = vmatprep.mubr.f32.mxu0 %v974
        %1127 = vmatmul.mubr.f32.gmra.mrb[0].mxu0 %v893
        %v1128 = vpop.f32.mrb[0].mxu0
        %v1129 = vadd.f32 %v987, %v1128
        %v1130 = vpop.f32.mrb[0].mxu0
        %1131 = vdwg.mxu0
        %v1132 = vadd.f32 %v1058, %v739
        %v1133 = vxor.u32 %v1132, 2147483648
        %v1134 = vmul.f32 %v1133, 1.442695
        %v1135 = vpow.pop %v1134
        %v1136 = vadd.f32 %v1135, 1.0
        %v1137 = vrcp.pop %v1136
        %v1138 = vmul.f32 1.0, %v1137
        %v1139 = vadd.f32 %v1060, %v741
        %v1140 = vxor.u32 %v1139, 2147483648
        %v1141 = vmul.f32 %v1140, 1.442695
        %v1142 = vpow.pop %v1141
        %v1143 = vadd.f32 %v1142, 1.0
        %v1144 = vrcp.pop %v1143
        %v1145 = vmul.f32 1.0, %v1144
        %v1146 = vmul.f32 %v1138, %v810
        %v1147 = vadd.f32 %v1129, %v1146
        %v1148 = vtanh.pop %v1147
        %v1149 = vsub.f32 %v574, %v1148
        %v1150 = vmul.f32 %v1145, %v1149
        %v1151 = vadd.f32 %v1148, %v1150
        %1152 = vmatprep.subr.mxu0 %v397
        %1153 = vmatpush1.msra.mxu0 %v396
        %1154 = vmatprep.subr.mxu0 %v402
        %1155 = vmatpush1.msra.mxu0 %v401
        %1156 = vmatprep.subr.mxu0 %v407
        %1157 = vmatpush1.msra.mxu0 %v406
        %1158 = vmatprep.subr.mxu0 %v412
        %1159 = vmatpush1.msra.mxu0 %v411
        %1160 = vmatprep.subr.mxu0 %v417
        %1161 = vmatpush1.msra.mxu0 %v416
        %1162 = vmatprep.subr.mxu0 %v422
        %1163 = vmatpush1.msra.mxu0 %v421
        %1164 = vmatprep.subr.mxu0 %v427
        %1165 = vmatpush1.msra.mxu0 %v426
        %1166 = vmatprep.subr.mxu0 %v432
        %1167 = vmatpush1.msra.mxu0 %v431
        %1168 = vmatprep.subr.mxu0 %v437
        %1169 = vmatpush1.msra.mxu0 %v436
        %1170 = vmatprep.subr.mxu0 %v442
        %1171 = vmatpush1.msra.mxu0 %v441
        %1172 = vmatprep.subr.mxu0 %v447
        %1173 = vmatpush1.msra.mxu0 %v446
        %1174 = vmatprep.subr.mxu0 %v452
        %1175 = vmatpush1.msra.mxu0 %v451
        %1176 = vmatprep.subr.mxu0 %v457
        %1177 = vmatpush1.msra.mxu0 %v456
        %1178 = vmatprep.subr.mxu0 %v462
        %1179 = vmatpush1.msra.mxu0 %v461
        %1180 = vmatprep.subr.mxu0 %v467
        %1181 = vmatpush1.msra.mxu0 %v466
        %1182 = vmatprep.subr.mxu0 %v472
        %1183 = vmatpush1.msra.mxu0 %v471
        %1184 = vmatprep.subr.mxu0 0.0
        %1185 = vmatpush1.msra.mxu0 0.0
        %1186 = vmatprep.subr.mxu0 0.0
        %1187 = vmatpush1.msra.mxu0 0.0
        %1188 = vmatprep.subr.mxu0 0.0
        %1189 = vmatpush1.msra.mxu0 0.0
        %1190 = vmatprep.subr.mxu0 0.0
        %1191 = vmatpush1.msra.mxu0 0.0
        %1192 = vmatprep.subr.mxu0 0.0
        %1193 = vmatpush1.msra.mxu0 0.0
        %1194 = vmatprep.subr.mxu0 0.0
        %1195 = vmatpush1.msra.mxu0 0.0
        %1196 = vmatprep.subr.mxu0 0.0
        %1197 = vmatpush1.msra.mxu0 0.0
        %1198 = vmatprep.subr.mxu0 0.0
        %1199 = vmatpush1.msra.mxu0 0.0
        %1200 = vmatprep.subr.mxu0 0.0
        %1201 = vmatpush1.msra.mxu0 0.0
        %1202 = vmatprep.subr.mxu0 0.0
        %1203 = vmatpush1.msra.mxu0 0.0
        %1204 = vmatprep.subr.mxu0 0.0
        %1205 = vmatpush1.msra.mxu0 0.0
        %1206 = vmatprep.subr.mxu0 0.0
        %1207 = vmatpush1.msra.mxu0 0.0
        %1208 = vmatprep.subr.mxu0 0.0
        %1209 = vmatpush1.msra.mxu0 0.0
        %1210 = vmatprep.subr.mxu0 0.0
        %1211 = vmatpush1.msra.mxu0 0.0
        %1212 = vmatprep.subr.mxu0 0.0
        %1213 = vmatpush1.msra.mxu0 0.0
        %1214 = vmatprep.subr.mxu0 0.0
        %1215 = vmatpush1.msra.mxu0 0.0
        %1216 = vmatprep.mubr.f32.mxu0 0.0
        %1217 = vmatmul.mubr.f32.gmra.mrb[0].mxu0 %v1151
        %v1218 = vpop.f32.mrb[0].mxu0
        %v1219 = vadd.f32 %v579, %v1218
        %v1220 = vpop.f32.mrb[0].mxu0
        %v1221 = vadd.f32 %v583, %v1220
        %1222 = vdwg.mxu0
        %1223 = vmatprep.subr.mxu0 %v399
        %1224 = vmatpush1.msra.mxu0 %v398
        %1225 = vmatprep.subr.mxu0 %v404
        %1226 = vmatpush1.msra.mxu0 %v403
        %1227 = vmatprep.subr.mxu0 %v409
        %1228 = vmatpush1.msra.mxu0 %v408
        %1229 = vmatprep.subr.mxu0 %v414
        %1230 = vmatpush1.msra.mxu0 %v413
        %1231 = vmatprep.subr.mxu0 %v419
        %1232 = vmatpush1.msra.mxu0 %v418
        %1233 = vmatprep.subr.mxu0 %v424
        %1234 = vmatpush1.msra.mxu0 %v423
        %1235 = vmatprep.subr.mxu0 %v429
        %1236 = vmatpush1.msra.mxu0 %v428
        %1237 = vmatprep.subr.mxu0 %v434
        %1238 = vmatpush1.msra.mxu0 %v433
        %1239 = vmatprep.subr.mxu0 %v439
        %1240 = vmatpush1.msra.mxu0 %v438
        %1241 = vmatprep.subr.mxu0 %v444
        %1242 = vmatpush1.msra.mxu0 %v443
        %1243 = vmatprep.subr.mxu0 %v449
        %1244 = vmatpush1.msra.mxu0 %v448
        %1245 = vmatprep.subr.mxu0 %v454
        %1246 = vmatpush1.msra.mxu0 %v453
        %1247 = vmatprep.subr.mxu0 %v459
        %1248 = vmatpush1.msra.mxu0 %v458
        %1249 = vmatprep.subr.mxu0 %v464
        %1250 = vmatpush1.msra.mxu0 %v463
        %1251 = vmatprep.subr.mxu0 %v469
        %1252 = vmatpush1.msra.mxu0 %v468
        %1253 = vmatprep.subr.mxu0 %v474
        %1254 = vmatpush1.msra.mxu0 %v473
        %1255 = vmatprep.subr.mxu0 0.0
        %1256 = vmatpush1.msra.mxu0 0.0
        %1257 = vmatprep.subr.mxu0 0.0
        %1258 = vmatpush1.msra.mxu0 0.0
        %1259 = vmatprep.subr.mxu0 0.0
        %1260 = vmatpush1.msra.mxu0 0.0
        %1261 = vmatprep.subr.mxu0 0.0
        %1262 = vmatpush1.msra.mxu0 0.0
        %1263 = vmatprep.subr.mxu0 0.0
        %1264 = vmatpush1.msra.mxu0 0.0
        %1265 = vmatprep.subr.mxu0 0.0
        %1266 = vmatpush1.msra.mxu0 0.0
        %1267 = vmatprep.subr.mxu0 0.0
        %1268 = vmatpush1.msra.mxu0 0.0
        %1269 = vmatprep.subr.mxu0 0.0
        %1270 = vmatpush1.msra.mxu0 0.0
        %1271 = vmatprep.subr.mxu0 0.0
        %1272 = vmatpush1.msra.mxu0 0.0
        %1273 = vmatprep.subr.mxu0 0.0
        %1274 = vmatpush1.msra.mxu0 0.0
        %1275 = vmatprep.subr.mxu0 0.0
        %1276 = vmatpush1.msra.mxu0 0.0
        %1277 = vmatprep.subr.mxu0 0.0
        %1278 = vmatpush1.msra.mxu0 0.0
        %1279 = vmatprep.subr.mxu0 0.0
        %1280 = vmatpush1.msra.mxu0 0.0
        %1281 = vmatprep.subr.mxu0 0.0
        %1282 = vmatpush1.msra.mxu0 0.0
        %1283 = vmatprep.subr.mxu0 0.0
        %1284 = vmatpush1.msra.mxu0 0.0
        %1285 = vmatprep.subr.mxu0 0.0
        %1286 = vmatpush1.msra.mxu0 0.0
        %1287 = vmatprep.mubr.f32.mxu0 0.0
        %1288 = vmatmul.mubr.f32.gmra.mrb[0].mxu0 %v1151
        %v1289 = vpop.f32.mrb[0].mxu0
        %v1290 = vadd.f32 %v587, %v1289
        %v1291 = vpop.f32.mrb[0].mxu0
        %v1292 = vadd.f32 %v591, %v1291
        %1293 = vdwg.mxu0
        %1294 = vmatprep.subr.mxu0 0.0
        %1295 = vmatpush1.msra.mxu0 %v400
        %1296 = vmatprep.subr.mxu0 0.0
        %1297 = vmatpush1.msra.mxu0 %v405
        %1298 = vmatprep.subr.mxu0 0.0
        %1299 = vmatpush1.msra.mxu0 %v410
        %1300 = vmatprep.subr.mxu0 0.0
        %1301 = vmatpush1.msra.mxu0 %v415
        %1302 = vmatprep.subr.mxu0 0.0
        %1303 = vmatpush1.msra.mxu0 %v420
        %1304 = vmatprep.subr.mxu0 0.0
        %1305 = vmatpush1.msra.mxu0 %v425
        %1306 = vmatprep.subr.mxu0 0.0
        %1307 = vmatpush1.msra.mxu0 %v430
        %1308 = vmatprep.subr.mxu0 0.0
        %1309 = vmatpush1.msra.mxu0 %v435
        %1310 = vmatprep.subr.mxu0 0.0
        %1311 = vmatpush1.msra.mxu0 %v440
        %1312 = vmatprep.subr.mxu0 0.0
        %1313 = vmatpush1.msra.mxu0 %v445
        %1314 = vmatprep.subr.mxu0 0.0
        %1315 = vmatpush1.msra.mxu0 %v450
        %1316 = vmatprep.subr.mxu0 0.0
        %1317 = vmatpush1.msra.mxu0 %v455
        %1318 = vmatprep.subr.mxu0 0.0
        %1319 = vmatpush1.msra.mxu0 %v460
        %1320 = vmatprep.subr.mxu0 0.0
        %1321 = vmatpush1.msra.mxu0 %v465
        %1322 = vmatprep.subr.mxu0 0.0
        %1323 = vmatpush1.msra.mxu0 %v470
        %1324 = vmatprep.subr.mxu0 0.0
        %1325 = vmatpush1.msra.mxu0 %v475
        %1326 = vmatprep.subr.mxu0 0.0
        %1327 = vmatpush1.msra.mxu0 0.0
        %1328 = vmatprep.subr.mxu0 0.0
        %1329 = vmatpush1.msra.mxu0 0.0
        %1330 = vmatprep.subr.mxu0 0.0
        %1331 = vmatpush1.msra.mxu0 0.0
        %1332 = vmatprep.subr.mxu0 0.0
        %1333 = vmatpush1.msra.mxu0 0.0
        %1334 = vmatprep.subr.mxu0 0.0
        %1335 = vmatpush1.msra.mxu0 0.0
        %1336 = vmatprep.subr.mxu0 0.0
        %1337 = vmatpush1.msra.mxu0 0.0
        %1338 = vmatprep.subr.mxu0 0.0
        %1339 = vmatpush1.msra.mxu0 0.0
        %1340 = vmatprep.subr.mxu0 0.0
        %1341 = vmatpush1.msra.mxu0 0.0
        %1342 = vmatprep.subr.mxu0 0.0
        %1343 = vmatpush1.msra.mxu0 0.0
        %1344 = vmatprep.subr.mxu0 0.0
        %1345 = vmatpush1.msra.mxu0 0.0
        %1346 = vmatprep.subr.mxu0 0.0
        %1347 = vmatpush1.msra.mxu0 0.0
        %1348 = vmatprep.subr.mxu0 0.0
        %1349 = vmatpush1.msra.mxu0 0.0
        %1350 = vmatprep.subr.mxu0 0.0
        %1351 = vmatpush1.msra.mxu0 0.0
        %1352 = vmatprep.subr.mxu0 0.0
        %1353 = vmatpush1.msra.mxu0 0.0
        %1354 = vmatprep.subr.mxu0 0.0
        %1355 = vmatpush1.msra.mxu0 0.0
        %1356 = vmatprep.subr.mxu0 0.0
        %1357 = vmatpush1.msra.mxu0 0.0
        %1358 = vmatprep.mubr.f32.mxu0 0.0
        %1359 = vmatmul.mubr.f32.gmra.mrb[0].mxu0 %v1151
        %v1360 = vpop.f32.mrb[0].mxu0
        %v1361 = vadd.f32 %v595, %v1360
        %v1362 = vpop.f32.mrb[0].mxu0
        %1363 = vdwg.mxu0
        %v1364 = vlaneseq
        %v1365 = vshrl.u32 %v1364, 7
        %v1366 = vsub.s32 0, %v1365
        %v1367 = vrot.slane %v1219, %v1366
        %v1368 = vmul.f32 %v816, %v1367
        %v1369 = vadd.f32 %v1368, 0.0
        %v1370 = vlaneseq
        %v1371 = vshrl.u32 %v1370, 7
        %v1372 = vsub.s32 1, %v1371
        %v1373 = vrot.slane %v1219, %v1372
        %v1374 = vmul.f32 %v826, %v1373
        %v1375 = vadd.f32 %v1369, %v1374
        %v1376 = vlaneseq
        %v1377 = vshrl.u32 %v1376, 7
        %v1378 = vsub.s32 2, %v1377
        %v1379 = vrot.slane %v1219, %v1378
        %v1380 = vmul.f32 %v836, %v1379
        %v1381 = vadd.f32 %v1375, %v1380
        %v1382 = vlaneseq
        %v1383 = vshrl.u32 %v1382, 7
        %v1384 = vsub.s32 3, %v1383
        %v1385 = vrot.slane %v1219, %v1384
        %v1386 = vmul.f32 %v846, %v1385
        %v1387 = vadd.f32 %v1381, %v1386
        %v1388 = vlaneseq
        %v1389 = vshrl.u32 %v1388, 7
        %v1390 = vsub.s32 4, %v1389
        %v1391 = vrot.slane %v1219, %v1390
        %v1392 = vmul.f32 %v856, %v1391
        %v1393 = vadd.f32 %v1387, %v1392
        %v1394 = vlaneseq
        %v1395 = vshrl.u32 %v1394, 7
        %v1396 = vsub.s32 5, %v1395
        %v1397 = vrot.slane %v1219, %v1396
        %v1398 = vmul.f32 %v866, %v1397
        %v1399 = vadd.f32 %v1393, %v1398
        %v1400 = vlaneseq
        %v1401 = vshrl.u32 %v1400, 7
        %v1402 = vsub.s32 6, %v1401
        %v1403 = vrot.slane %v1219, %v1402
        %v1404 = vmul.f32 %v876, %v1403
        %v1405 = vadd.f32 %v1399, %v1404
        %v1406 = vlaneseq
        %v1407 = vshrl.u32 %v1406, 7
        %v1408 = vsub.s32 7, %v1407
        %v1409 = vrot.slane %v1219, %v1408
        %v1410 = vmul.f32 %v886, %v1409
        %v1411 = vadd.f32 %v1405, %v1410
        %v1412 = vlaneseq
        %v1413 = vshrl.u32 %v1412, 7
        %v1414 = vsub.s32 0, %v1413
        %v1415 = vrot.slane %v1221, %v1414
        %v1416 = vmul.f32 %v897, %v1415
        %v1417 = vadd.f32 %v1416, 0.0
        %v1418 = vlaneseq
        %v1419 = vshrl.u32 %v1418, 7
        %v1420 = vsub.s32 1, %v1419
        %v1421 = vrot.slane %v1221, %v1420
        %v1422 = vmul.f32 %v907, %v1421
        %v1423 = vadd.f32 %v1417, %v1422
        %v1424 = vlaneseq
        %v1425 = vshrl.u32 %v1424, 7
        %v1426 = vsub.s32 2, %v1425
        %v1427 = vrot.slane %v1221, %v1426
        %v1428 = vmul.f32 %v917, %v1427
        %v1429 = vadd.f32 %v1423, %v1428
        %v1430 = vlaneseq
        %v1431 = vshrl.u32 %v1430, 7
        %v1432 = vsub.s32 3, %v1431
        %v1433 = vrot.slane %v1221, %v1432
        %v1434 = vmul.f32 %v927, %v1433
        %v1435 = vadd.f32 %v1429, %v1434
        %v1436 = vlaneseq
        %v1437 = vshrl.u32 %v1436, 7
        %v1438 = vsub.s32 4, %v1437
        %v1439 = vrot.slane %v1221, %v1438
        %v1440 = vmul.f32 %v937, %v1439
        %v1441 = vadd.f32 %v1435, %v1440
        %v1442 = vlaneseq
        %v1443 = vshrl.u32 %v1442, 7
        %v1444 = vsub.s32 5, %v1443
        %v1445 = vrot.slane %v1221, %v1444
        %v1446 = vmul.f32 %v947, %v1445
        %v1447 = vadd.f32 %v1441, %v1446
        %v1448 = vlaneseq
        %v1449 = vshrl.u32 %v1448, 7
        %v1450 = vsub.s32 6, %v1449
        %v1451 = vrot.slane %v1221, %v1450
        %v1452 = vmul.f32 %v957, %v1451
        %v1453 = vadd.f32 %v1447, %v1452
        %v1454 = vlaneseq
        %v1455 = vshrl.u32 %v1454, 7
        %v1456 = vsub.s32 7, %v1455
        %v1457 = vrot.slane %v1221, %v1456
        %v1458 = vmul.f32 %v967, %v1457
        %v1459 = vadd.f32 %v1453, %v1458
        %1460 = vmatprep.subr.mxu0 %v478
        %1461 = vmatpush1.msra.mxu0 %v477
        %1462 = vmatprep.subr.mxu0 %v481
        %1463 = vmatpush1.msra.mxu0 %v480
        %1464 = vmatprep.subr.mxu0 %v484
        %1465 = vmatpush1.msra.mxu0 %v483
        %1466 = vmatprep.subr.mxu0 %v487
        %1467 = vmatpush1.msra.mxu0 %v486
        %1468 = vmatprep.subr.mxu0 %v490
        %1469 = vmatpush1.msra.mxu0 %v489
        %1470 = vmatprep.subr.mxu0 %v493
        %1471 = vmatpush1.msra.mxu0 %v492
        %1472 = vmatprep.subr.mxu0 %v496
        %1473 = vmatpush1.msra.mxu0 %v495
        %1474 = vmatprep.subr.mxu0 %v499
        %1475 = vmatpush1.msra.mxu0 %v498
        %1476 = vmatprep.subr.mxu0 %v502
        %1477 = vmatpush1.msra.mxu0 %v501
        %1478 = vmatprep.subr.mxu0 %v505
        %1479 = vmatpush1.msra.mxu0 %v504
        %1480 = vmatprep.subr.mxu0 %v508
        %1481 = vmatpush1.msra.mxu0 %v507
        %1482 = vmatprep.subr.mxu0 %v511
        %1483 = vmatpush1.msra.mxu0 %v510
        %1484 = vmatprep.subr.mxu0 %v514
        %1485 = vmatpush1.msra.mxu0 %v513
        %1486 = vmatprep.subr.mxu0 %v517
        %1487 = vmatpush1.msra.mxu0 %v516
        %1488 = vmatprep.subr.mxu0 %v520
        %1489 = vmatpush1.msra.mxu0 %v519
        %1490 = vmatprep.subr.mxu0 %v523
        %1491 = vmatpush1.msra.mxu0 %v522
        %1492 = vmatprep.subr.mxu0 %v526
        %1493 = vmatpush1.msra.mxu0 %v525
        %1494 = vmatprep.subr.mxu0 %v529
        %1495 = vmatpush1.msra.mxu0 %v528
        %1496 = vmatprep.subr.mxu0 %v532
        %1497 = vmatpush1.msra.mxu0 %v531
        %1498 = vmatprep.subr.mxu0 %v535
        %1499 = vmatpush1.msra.mxu0 %v534
        %1500 = vmatprep.subr.mxu0 %v538
        %1501 = vmatpush1.msra.mxu0 %v537
        %1502 = vmatprep.subr.mxu0 %v541
        %1503 = vmatpush1.msra.mxu0 %v540
        %1504 = vmatprep.subr.mxu0 %v544
        %1505 = vmatpush1.msra.mxu0 %v543
        %1506 = vmatprep.subr.mxu0 %v547
        %1507 = vmatpush1.msra.mxu0 %v546
        %1508 = vmatprep.subr.mxu0 %v550
        %1509 = vmatpush1.msra.mxu0 %v549
        %1510 = vmatprep.subr.mxu0 %v553
        %1511 = vmatpush1.msra.mxu0 %v552
        %1512 = vmatprep.subr.mxu0 %v556
        %1513 = vmatpush1.msra.mxu0 %v555
        %1514 = vmatprep.subr.mxu0 %v559
        %1515 = vmatpush1.msra.mxu0 %v558
        %1516 = vmatprep.subr.mxu0 %v562
        %1517 = vmatpush1.msra.mxu0 %v561
        %1518 = vmatprep.subr.mxu0 %v565
        %1519 = vmatpush1.msra.mxu0 %v564
        %1520 = vmatprep.subr.mxu0 %v568
        %1521 = vmatpush1.msra.mxu0 %v567
        %1522 = vmatprep.subr.mxu0 %v571
        %1523 = vmatpush1.msra.mxu0 %v570
        %1524 = vmatprep.mubr.f32.mxu0 %v1459
        %1525 = vmatmul.mubr.f32.gmra.mrb[0].mxu0 %v1411
        %v1526 = vpop.f32.mrb[0].mxu0
        %v1527 = vadd.f32 %v979, %v1526
        %v1528 = vpop.f32.mrb[0].mxu0
        %v1529 = vadd.f32 %v983, %v1528
        %1530 = vdwg.mxu0
        %1531 = vmatprep.subr.mxu0 0.0
        %1532 = vmatpush1.msra.mxu0 %v479
        %1533 = vmatprep.subr.mxu0 0.0
        %1534 = vmatpush1.msra.mxu0 %v482
        %1535 = vmatprep.subr.mxu0 0.0
        %1536 = vmatpush1.msra.mxu0 %v485
        %1537 = vmatprep.subr.mxu0 0.0
        %1538 = vmatpush1.msra.mxu0 %v488
        %1539 = vmatprep.subr.mxu0 0.0
        %1540 = vmatpush1.msra.mxu0 %v491
        %1541 = vmatprep.subr.mxu0 0.0
        %1542 = vmatpush1.msra.mxu0 %v494
        %1543 = vmatprep.subr.mxu0 0.0
        %1544 = vmatpush1.msra.mxu0 %v497
        %1545 = vmatprep.subr.mxu0 0.0
        %1546 = vmatpush1.msra.mxu0 %v500
        %1547 = vmatprep.subr.mxu0 0.0
        %1548 = vmatpush1.msra.mxu0 %v503
        %1549 = vmatprep.subr.mxu0 0.0
        %1550 = vmatpush1.msra.mxu0 %v506
        %1551 = vmatprep.subr.mxu0 0.0
        %1552 = vmatpush1.msra.mxu0 %v509
        %1553 = vmatprep.subr.mxu0 0.0
        %1554 = vmatpush1.msra.mxu0 %v512
        %1555 = vmatprep.subr.mxu0 0.0
        %1556 = vmatpush1.msra.mxu0 %v515
        %1557 = vmatprep.subr.mxu0 0.0
        %1558 = vmatpush1.msra.mxu0 %v518
        %1559 = vmatprep.subr.mxu0 0.0
        %1560 = vmatpush1.msra.mxu0 %v521
        %1561 = vmatprep.subr.mxu0 0.0
        %1562 = vmatpush1.msra.mxu0 %v524
        %1563 = vmatprep.subr.mxu0 0.0
        %1564 = vmatpush1.msra.mxu0 %v527
        %1565 = vmatprep.subr.mxu0 0.0
        %1566 = vmatpush1.msra.mxu0 %v530
        %1567 = vmatprep.subr.mxu0 0.0
        %1568 = vmatpush1.msra.mxu0 %v533
        %1569 = vmatprep.subr.mxu0 0.0
        %1570 = vmatpush1.msra.mxu0 %v536
        %1571 = vmatprep.subr.mxu0 0.0
        %1572 = vmatpush1.msra.mxu0 %v539
        %1573 = vmatprep.subr.mxu0 0.0
        %1574 = vmatpush1.msra.mxu0 %v542
        %1575 = vmatprep.subr.mxu0 0.0
        %1576 = vmatpush1.msra.mxu0 %v545
        %1577 = vmatprep.subr.mxu0 0.0
        %1578 = vmatpush1.msra.mxu0 %v548
        %1579 = vmatprep.subr.mxu0 0.0
        %1580 = vmatpush1.msra.mxu0 %v551
        %1581 = vmatprep.subr.mxu0 0.0
        %1582 = vmatpush1.msra.mxu0 %v554
        %1583 = vmatprep.subr.mxu0 0.0
        %1584 = vmatpush1.msra.mxu0 %v557
        %1585 = vmatprep.subr.mxu0 0.0
        %1586 = vmatpush1.msra.mxu0 %v560
        %1587 = vmatprep.subr.mxu0 0.0
        %1588 = vmatpush1.msra.mxu0 %v563
        %1589 = vmatprep.subr.mxu0 0.0
        %1590 = vmatpush1.msra.mxu0 %v566
        %1591 = vmatprep.subr.mxu0 0.0
        %1592 = vmatpush1.msra.mxu0 %v569
        %1593 = vmatprep.subr.mxu0 0.0
        %1594 = vmatpush1.msra.mxu0 %v572
        %1595 = vmatprep.mubr.f32.mxu0 %v1459
        %1596 = vmatmul.mubr.f32.gmra.mrb[0].mxu0 %v1411
        %v1597 = vpop.f32.mrb[0].mxu0
        %v1598 = vadd.f32 %v987, %v1597
        %v1599 = vpop.f32.mrb[0].mxu0
        %1600 = vdwg.mxu0
        %v1601 = vadd.f32 %v1527, %v1290
        %v1602 = vxor.u32 %v1601, 2147483648
        %v1603 = vmul.f32 %v1602, 1.442695
        %v1604 = vpow.pop %v1603
        %v1605 = vadd.f32 %v1604, 1.0
        %v1606 = vrcp.pop %v1605
        %v1607 = vmul.f32 1.0, %v1606
        %v1608 = vadd.f32 %v1529, %v1292
        %v1609 = vxor.u32 %v1608, 2147483648
        %v1610 = vmul.f32 %v1609, 1.442695
        %v1611 = vpow.pop %v1610
        %v1612 = vadd.f32 %v1611, 1.0
        %v1613 = vrcp.pop %v1612
        %v1614 = vmul.f32 1.0, %v1613
        %v1615 = vmul.f32 %v1607, %v1361
        %v1616 = vadd.f32 %v1598, %v1615
        %v1617 = vtanh.pop %v1616
        %v1618 = vsub.f32 %v1151, %v1617
        %v1619 = vmul.f32 %v1614, %v1618
        %v1620 = vadd.f32 %v1617, %v1619
        %1621 = vst [vmem:[%s393] sm:$0xff] %v1620
        %s1622 = sand.u32 %s198, 1
        %s1623 = scalar_lea.sflag [#allocation4], %s1622
        %s1624 = sand.u32 %s198, 1
        %s1625 = smul.addr %s1624, 8
        %s1626 = scalar_lea.vmem [#allocation11], %s1625
        // Predicated region
        $region69: #{tpu_custom_call.1} parent=47 // pred_check
          %p1627 = pneg %p208
        $region70: #{tpu_custom_call.1} parent=47 // pred_check_branch
          %1629 = sbr.rel (%p1627) target = $region72
        $region71: #{tpu_custom_call.1} parent=47 // pred_region
          %s1631 = ssub.s32 128, 128
          %1632 = vsyncadd %s1623, %s1631
          %s1633 = smul.addr %s28, 128
          %s1634 = scalar_lea.hbm %s7, %s1633
          %s1636 = sshll.u32 %s1626, 4
          %s1637 = int_to_ptr.vmem [resolvable:$true] %s1636
          %1639 = dma.vmem_to_hbm [thread:$0]  %s1637, 128, %s1634, %s1623
        $region72: #{tpu_custom_call.1} parent=47 // pred_fallthru
          _
      $region48: #{tpu_custom_call.1} parent=5 // pred_fallthru
        _
      %p1640 = scmp.le.s32.totalorder 2, %s23
      // Predicated region
      $region73: #{tpu_custom_call.1} parent=5 // pred_check
        %p1641 = pneg %p1640
      $region74: #{tpu_custom_call.1} parent=5 // pred_check_branch
        %1643 = sbr.rel (%p1641) target = $region76
      $region75: #{tpu_custom_call.1} parent=5 // pred_region
        %s1644 = ssub.s32 %s23, 2
        // Predicated region
        $region77: #{tpu_custom_call.1} parent=75 // pred_check
          %p1645 = pneg %p214
        $region78: #{tpu_custom_call.1} parent=75 // pred_check_branch
          %1647 = sbr.rel (%p1645) target = $region80
        $region79: #{tpu_custom_call.1} parent=75 // pred_region
          %s1648 = sand.u32 %s199, 1
          %s1649 = scalar_lea.sflag [#allocation4], %s1648
          %s1650 = sand.u32 %s199, 1
          %s1651 = smul.addr %s1650, 8
          %s1652 = scalar_lea.vmem [#allocation11], %s1651
          %1653 = dma.done %s1649, 128
        $region80: #{tpu_custom_call.1} parent=75 // pred_fallthru
          _
      $region76: #{tpu_custom_call.1} parent=5 // pred_fallthru
        _
    $region6: #{tpu_custom_call.1} parent=1 // loop_footer
      %s27 = sadd.s32 1, %s23
    $region7: #{tpu_custom_call.1} parent=1 // loop_footer_branch
      %22 = sbr.rel target = $region3
    $region8: #{tpu_custom_call.1} parent=1 // loop_exit
      _
    %1654 = vsyncpa [#allocation3], 1
    %s1655 = scalar_lea.sflag [#allocation3], 1
    %1656 = vsyncpa %s1655, 1
    %1657 = vsyncpa [#allocation6], 1
    %s1658 = scalar_lea.sflag [#allocation6], 1
    %1659 = vsyncpa %s1658, 1
    %1660 = vsyncpa [#allocation9], 1
    %1661 = vsyncpa [#allocation4], 1
    %s1662 = scalar_lea.sflag [#allocation4], 1
    %1663 = vsyncpa %s1662, 1

</llo_original>
